<compile_context>
chip_gen: v6e
topology: v6e:2x2x1
jax: 0.10.0
libtpu: 0.0.40
codegen_flags: <defaults>
</compile_context>

<pallas_src>
import functools

import jax
import jax.numpy as jnp
from jax import lax
from jax.experimental import pallas as pl
from jax.experimental.pallas import tpu as pltpu


def _round_up(n, m):
    return ((n + m - 1) // m) * m


def _global_self_attn_kernel(x_ref, mem_ref, mask_ref, w_in_t_ref, w_out_t_ref,
                             attn_ref, align_ref, *, s_valid):
    i = pl.program_id(1)                       # target-tile index (global diagonal offset)

    x = x_ref[0]                               # (tq, Dp) f32 query tile
    mem = mem_ref[0]                           # (Sp, Dp) bf16 memory bank (reused over i)
    mask = mask_ref[0]                         # (1, Sp)  int32 memory mask (nonzero = valid)

    tq = x.shape[0]
    s_pad = mem.shape[0]

    xb = x.astype(jnp.bfloat16)

    # --- 'general' score: (x @ W_in^T) @ mem^T ; bf16 MXU inputs, f32 accumulation -------
    q = jnp.dot(xb, w_in_t_ref[...], preferred_element_type=jnp.float32)
    scores = lax.dot_general(q.astype(jnp.bfloat16), mem, (((1,), (1,)), ((), ())),
                             preferred_element_type=jnp.float32)           # (tq, Sp)

    # --- mask: invalid src OR diagonal -> +1e18 (exact reference `-float(-1e18)` value) ---
    col = lax.broadcasted_iota(jnp.int32, (tq, s_pad), 1)
    row = i * tq + lax.broadcasted_iota(jnp.int32, (tq, 1), 0)
    keep = (mask > 0) & (col != row)
    scores = jnp.where(keep, scores, jnp.float32(1e18))
    if s_pad != s_valid:                       # static: only when the wrapper padded S
        scores = jnp.where(col < s_valid, scores, jnp.float32(-1e30))

    # --- softmax over src.  The diagonal is ALWAYS masked to +1e18, so every row's max is
    #     exactly that constant: subtract it directly (no per-row XLU max reduce needed). ---
    e = jnp.exp(scores - jnp.float32(1e18))    # exactly 1.0 on masked, 0.0 on valid/padded
    denom = jnp.sum(e, axis=-1, keepdims=True)
    recip = pl.reciprocal(denom, approx=True)  # EUP slot, frees VALU
    align = e * recip

    # --- context + fused output projection --------------------------------------------
    # c = (e @ mem) * recip == align @ mem ; e is exactly {0,1}, so its bf16 cast is exact.
    c = jnp.dot(e.astype(jnp.bfloat16), mem, preferred_element_type=jnp.float32) * recip
    cat = jnp.concatenate([c.astype(jnp.bfloat16), xb], axis=-1)           # (tq, 2*Dp)
    attn_h = jnp.dot(cat, w_out_t_ref[...], preferred_element_type=jnp.float32)
    attn_h = jax.nn.sigmoid(attn_h) * x        # gating with the f32 query

    attn_ref[...] = attn_h.astype(attn_ref.dtype)
    align_ref[...] = align.astype(align_ref.dtype)


def _physical_vmem_bytes():
    try:
        info = pltpu.get_tpu_info()
        cap = getattr(info, "vmem_capacity_bytes", None)
        if cap:
            return int(cap)
    except Exception:
        pass
    return 64 * 1024 * 1024                    # conservative (v7x); v5e/v6e have 128 MiB


def _vmem_working_set_bytes(bt, d_pad, s_pad, mem_buffers=2):
    f32, bf16 = 4, 2
    io = (2 * bt * d_pad * f32                 # x tile (double-buffered)
          + 2 * bt * d_pad * f32               # attn_h output block (double-buffered)
          + 2 * bt * s_pad * f32               # align output block (double-buffered)
          + 2 * s_pad * 4)                     # mask
    mem = mem_buffers * s_pad * d_pad * bf16   # memory bank (bf16)
    weights = 3 * d_pad * d_pad * bf16         # W_in^T (D,D) + stacked W_out^T (2D,D)
    temps = 4 * bt * s_pad * f32 + 5 * bt * d_pad * f32
    return io + mem + weights + temps


def global_self_attention(x, memory_bank, memory_mask, w_in, w_out,
                          *, block_t=None, vmem_limit_bytes=None):
    """x: (B, T, D), memory_bank: (B, S, D), memory_mask: (B, S) in {0,1}.
    w_in: (D, D) = linear_in.weight ; w_out: (D, 2D) = linear_out.weight.
    Returns (attn_h [T, B, D], align_vectors [T, B, S]) exactly like the PyTorch module."""
    B, T, D = x.shape
    _, S, _ = memory_bank.shape
    assert memory_bank.shape == (B, S, D)
    assert memory_mask.shape == (B, S)
    assert T == S, "self-attention diagonal mask (as in the PyTorch module) requires tgt_len == src_len"

    f32 = jnp.float32
    x = x.astype(f32)
    d_pad = _round_up(D, 128)
    s_pad = _round_up(S, 128)

    # --- block_t: biggest tile that fits the per-generation VMEM budget -----------------
    phys_vmem = _physical_vmem_bytes()
    budget = int(phys_vmem * 0.7)
    divisors = [c for c in (1024, 512, 256, 128, 64, 32, 16, 8) if T % c == 0]
    if block_t is None:
        cands = divisors if divisors else [T]
        block_t = next((c for c in cands
                        if _vmem_working_set_bytes(c, d_pad, s_pad) <= budget), cands[-1])
        # v7x has 2 TensorCores: make sure the ("parallel","parallel") grid has >= 2 steps.
        if B * (T // block_t) < 2:
            smaller = [c for c in divisors if c < block_t]
            if smaller:
                block_t = smaller[0]
    assert T % block_t == 0
    n_t = T // block_t

    if vmem_limit_bytes is None:
        est = _vmem_working_set_bytes(block_t, d_pad, s_pad)
        vmem_limit_bytes = int(min(max(2 * est, 32 * 1024 * 1024), phys_vmem * 0.9))

    # --- host-side prep: pad to lane multiples, pre-transpose + bf16-cast weights -------
    if d_pad != D:
        x_in = jnp.pad(x, ((0, 0), (0, 0), (0, d_pad - D)))
    else:
        x_in = x
    mem = memory_bank.astype(jnp.bfloat16)          # cast once here, not per grid step
    if d_pad != D or s_pad != S:
        mem = jnp.pad(mem, ((0, 0), (0, s_pad - S), (0, d_pad - D)))
    mask3 = memory_mask.astype(jnp.int32).reshape(B, 1, S)
    if s_pad != S:
        mask3 = jnp.pad(mask3, ((0, 0), (0, 0), (0, s_pad - S)))

    w_in_t = jnp.zeros((d_pad, d_pad), f32).at[:D, :D].set(jnp.asarray(w_in, f32).T)
    w_out_f = jnp.asarray(w_out, f32)
    w_out_t = jnp.zeros((2 * d_pad, d_pad), f32)
    w_out_t = w_out_t.at[:D, :D].set(w_out_f[:, :D].T)               # rows multiplying c
    w_out_t = w_out_t.at[d_pad:d_pad + D, :D].set(w_out_f[:, D:].T)  # rows multiplying x
    w_in_t = w_in_t.astype(jnp.bfloat16)
    w_out_t = w_out_t.astype(jnp.bfloat16)

    # Outputs are written directly in a time-major flattened layout (T, B*Dp)/(T, B*Sp):
    # lane-dense (unmasked vst) and the PyTorch (T,B,*) layout is a free reshape.
    out_shape = (jax.ShapeDtypeStruct((T, B * d_pad), x.dtype),
                 jax.ShapeDtypeStruct((T, B * s_pad), x.dtype))
    out_specs = [pl.BlockSpec((block_t, d_pad), lambda b, i: (i, b)),
                 pl.BlockSpec((block_t, s_pad), lambda b, i: (i, b))]

    kernel = functools.partial(_global_self_attn_kernel, s_valid=S)

    def _call(single_buffer_mem):
        mem_kwargs = {"pipeline_mode": pl.Buffered(1)} if single_buffer_mem else {}
        in_specs = [
            pl.BlockSpec((1, block_t, d_pad), lambda b, i: (b, i, 0)),            # x tile
            pl.BlockSpec((1, s_pad, d_pad), lambda b, i: (b, 0, 0), **mem_kwargs),  # memory bank
            pl.BlockSpec((1, 1, s_pad), lambda b, i: (b, 0, 0)),                  # memory mask
            pl.BlockSpec(memory_space=pltpu.VMEM),                                # W_in^T (resident)
            pl.BlockSpec(memory_space=pltpu.VMEM),                                # stacked W_out^T
        ]
        return pl.pallas_call(
            kernel,
            out_shape=out_shape,
            grid=(B, n_t),
            in_specs=in_specs,
            out_specs=out_specs,
            compiler_params=pltpu.CompilerParams(
                dimension_semantics=("parallel", "parallel"),
                vmem_limit_bytes=vmem_limit_bytes),
        )(x_in, mem, mask3, w_in_t, w_out_t)

    try:
        # memory-bank block index only changes on the slow batch axis -> single buffer
        attn_flat, align_flat = _call(True)
    except Exception:
        # fallback if this Pallas build rejects Buffered(1) on a pallas_call BlockSpec
        attn_flat, align_flat = _call(False)

    attn_h = attn_flat.reshape(T, B, d_pad)
    align = align_flat.reshape(T, B, s_pad)
    if d_pad != D:
        attn_h = attn_h[:, :, :D]
    if s_pad != S:
        align = align[:, :, :S]
    return attn_h, align


def _reference(x, memory_bank, memory_mask, w_in, w_out):
    """Literal JAX transcription of the PyTorch forward (incl. the -float(-1e18) == +1e18 fill)."""
    B, T, D = x.shape
    S = memory_bank.shape[1]
    q = x @ w_in.T
    align = jnp.einsum('btd,bsd->bts', q, memory_bank)
    mask = jnp.broadcast_to(memory_mask[:, None, :].astype(jnp.int32), (B, S, S))
    mask = mask * (1 - jnp.eye(S, dtype=jnp.int32))            # diagonal forced to 0
    align = jnp.where(mask > 0, align, jnp.float32(1e18))      # masked_fill_(1 - mask, +1e18)
    av = jax.nn.softmax(align, axis=2)
    c = jnp.einsum('bts,bsd->btd', av, memory_bank)
    attn_h = jnp.concatenate([c, x], axis=2) @ w_out.T
    attn_h = jax.nn.sigmoid(attn_h) * x
    return jnp.transpose(attn_h, (1, 0, 2)), jnp.transpose(av, (1, 0, 2))


def _make_inputs(B, T, D, key):
    kx, kw1, kw2, km = jax.random.split(key, 4)
    x = jax.random.normal(kx, (B, T, D), dtype=jnp.float32)
    # nn.Linear-style deterministic init: U(-1/sqrt(fan_in), 1/sqrt(fan_in))
    w_in = jax.random.uniform(kw1, (D, D), jnp.float32, minval=-(D ** -0.5), maxval=D ** -0.5)
    w_out = jax.random.uniform(kw2, (D, 2 * D), jnp.float32,
                               minval=-((2 * D) ** -0.5), maxval=(2 * D) ** -0.5)
    # binary memory mask (1 = valid); dropout exists in the module but is unused in forward
    memory_mask = (jax.random.uniform(km, (B, T)) > 0.2).astype(jnp.int32)
    return x, w_in, w_out, memory_mask


if __name__ == "__main__":
    root = jax.random.PRNGKey(0)
    k1, k2 = jax.random.split(root, 2)

    # Config 1: small, lane-unaligned (D=32, T=S=8) -> exercises the pad-to-128 path.
    B, T, D = 2, 8, 32
    x, w_in, w_out, mask = _make_inputs(B, T, D, k1)
    attn_h, align = global_self_attention(x, x, mask, w_in, w_out)
    jax.block_until_ready((attn_h, align))
    assert attn_h.shape == (T, B, D) and align.shape == (T, B, T)
    ref_h, ref_a = _reference(x, x, mask, w_in, w_out)
    # align is exact up to the approx-reciprocal; attn_h tolerance covers bf16 MXU inputs.
    assert bool(jnp.allclose(align, ref_a, atol=2e-2, rtol=2e-2))
    assert bool(jnp.allclose(attn_h, ref_h, atol=3e-2, rtol=3e-2))

    # Config 2: lane-aligned (D=S=128) -> no padding, fused time-major output path.
    B, T, D = 2, 128, 128
    x, w_in, w_out, mask = _make_inputs(B, T, D, k2)
    attn_h, align = global_self_attention(x, x, mask, w_in, w_out)
    jax.block_until_ready((attn_h, align))
    assert attn_h.shape == (T, B, D) and align.shape == (T, B, T)
    ref_h, ref_a = _reference(x, x, mask, w_in, w_out)
    assert bool(jnp.allclose(align, ref_a, atol=2e-2, rtol=2e-2))
    assert bool(jnp.allclose(attn_h, ref_h, atol=3e-2, rtol=3e-2))
    assert bool(jnp.isfinite(attn_h).all()) and bool(jnp.isfinite(align).all())

    print("KERNEL_OK")
</pallas_src>

<mosaic_0001>
module attributes {stable_mosaic.version = 11 : i64} {
  func.func @_global_self_attn_kernel(%arg0: i32, %arg1: i32, %arg2: memref<1x8x128xf32, #tpu.memory_space<vmem>>, %arg3: memref<1x128x128xbf16, #tpu.memory_space<vmem>>, %arg4: memref<1x1x128xi32, #tpu.memory_space<vmem>>, %arg5: memref<128x128xbf16, #tpu.memory_space<vmem>>, %arg6: memref<256x128xbf16, #tpu.memory_space<vmem>>, %arg7: memref<8x128xf32, #tpu.memory_space<vmem>>, %arg8: memref<8x128xf32, #tpu.memory_space<vmem>>) attributes {dimension_semantics = [#tpu.dimension_semantics<parallel>, #tpu.dimension_semantics<parallel>], iteration_bounds = array<i64: 2, 1>, scalar_prefetch = 0 : i64, scratch_operands = 0 : i64, tpu.core_type = #tpu.core_type<tc>, window_params = [{transform_indices = @transform_0, window_bounds = array<i64: 1, 8, 128>}, {pipeline_mode = #tpu.pipeline_mode<synchronous>, transform_indices = @transform_1, window_bounds = array<i64: 1, 128, 128>}, {transform_indices = @transform_2, window_bounds = array<i64: 1, 1, 128>}, {pipeline_mode = #tpu.pipeline_mode<synchronous>, transform_indices = @transform_3, window_bounds = array<i64: 128, 128>}, {pipeline_mode = #tpu.pipeline_mode<synchronous>, transform_indices = @transform_4, window_bounds = array<i64: 256, 128>}, {transform_indices = @transform_5, window_bounds = array<i64: 8, 128>}, {transform_indices = @transform_6, window_bounds = array<i64: 8, 128>}]} {
    %c0 = arith.constant 0 : index
    %c0_0 = arith.constant 0 : index
    %c0_1 = arith.constant 0 : index
    %0 = vector.load %arg2[%c0, %c0_0, %c0_1] : memref<1x8x128xf32, #tpu.memory_space<vmem>>, vector<1x8x128xf32>
    %1 = vector.shape_cast %0 : vector<1x8x128xf32> to vector<8x128xf32>
    %c0_2 = arith.constant 0 : index
    %c0_3 = arith.constant 0 : index
    %c0_4 = arith.constant 0 : index
    %2 = vector.load %arg3[%c0_2, %c0_3, %c0_4] : memref<1x128x128xbf16, #tpu.memory_space<vmem>>, vector<1x128x128xbf16>
    %3 = vector.shape_cast %2 : vector<1x128x128xbf16> to vector<128x128xbf16>
    %c0_5 = arith.constant 0 : index
    %c0_6 = arith.constant 0 : index
    %c0_7 = arith.constant 0 : index
    %4 = vector.load %arg4[%c0_5, %c0_6, %c0_7] : memref<1x1x128xi32, #tpu.memory_space<vmem>>, vector<1x1x128xi32>
    %5 = vector.shape_cast %4 : vector<1x1x128xi32> to vector<1x128xi32>
    %6 = arith.truncf %1 : vector<8x128xf32> to vector<8x128xbf16>
    %c0_8 = arith.constant 0 : index
    %c0_9 = arith.constant 0 : index
    %7 = vector.load %arg5[%c0_8, %c0_9] : memref<128x128xbf16, #tpu.memory_space<vmem>>, vector<128x128xbf16>
    %cst = arith.constant dense<0.000000e+00> : vector<8x128xf32>
    %8 = tpu.matmul %6, %7, %cst {dimension_numbers = #tpu.dot_dimension_numbers<[1], [0], [0], [1], [0, 0, 1, 1], [], []>} : vector<8x128xbf16>, vector<128x128xbf16>, vector<8x128xf32> -> vector<8x128xf32>
    %9 = arith.truncf %8 : vector<8x128xf32> to vector<8x128xbf16>
    %cst_10 = arith.constant dense<0.000000e+00> : vector<8x128xf32>
    %10 = tpu.matmul %9, %3, %cst_10 {dimension_numbers = #tpu.dot_dimension_numbers<[1], [1], [0], [0], [0, 0, 1, 0], [], []>} : vector<8x128xbf16>, vector<128x128xbf16>, vector<8x128xf32> -> vector<8x128xf32>
    %11 = tpu.iota {dimensions = array<i32: 1>} : vector<8x128xi32>
    %c8_i32 = arith.constant 8 : i32
    %12 = arith.muli %arg1, %c8_i32 : i32
    %13 = tpu.iota {dimensions = array<i32: 0>} : vector<8x1xi32>
    %14 = vector.broadcast %12 : i32 to vector<8x1xi32>
    %15 = arith.addi %14, %13 : vector<8x1xi32>
    %c0_i32 = arith.constant 0 : i32
    %16 = vector.broadcast %c0_i32 : i32 to vector<1x128xi32>
    %17 = arith.cmpi sgt, %5, %16 : vector<1x128xi32>
    %18 = vector.broadcast %15 : vector<8x1xi32> to vector<8x128xi32>
    %19 = arith.cmpi ne, %11, %18 : vector<8x128xi32>
    %20 = vector.broadcast %17 : vector<1x128xi1> to vector<8x128xi1>
    %21 = arith.andi %20, %19 : vector<8x128xi1>
    %cst_11 = arith.constant 9.99999984E+17 : f32
    %22 = vector.broadcast %cst_11 : f32 to vector<8x128xf32>
    %23 = arith.select %21, %10, %22 : vector<8x128xi1>, vector<8x128xf32>
    %c8_i32_12 = arith.constant 8 : i32
    %24 = vector.broadcast %c8_i32_12 : i32 to vector<8x128xi32>
    %25 = arith.cmpi slt, %11, %24 : vector<8x128xi32>
    %cst_13 = arith.constant -1.000000e+30 : f32
    %26 = vector.broadcast %cst_13 : f32 to vector<8x128xf32>
    %27 = arith.select %25, %23, %26 : vector<8x128xi1>, vector<8x128xf32>
    %cst_14 = arith.constant 9.99999984E+17 : f32
    %28 = vector.broadcast %cst_14 : f32 to vector<8x128xf32>
    %29 = arith.subf %27, %28 : vector<8x128xf32>
    %30 = math.exp %29 : vector<8x128xf32>
    %cst_15 = arith.constant dense<0.000000e+00> : vector<8xf32>
    %31 = vector.multi_reduction <add>, %30, %cst_15 [1] : vector<8x128xf32> to vector<8xf32>
    %32 = vector.shape_cast %31 : vector<8xf32> to vector<8x1xf32>
    %33 = tpu.reciprocal %32 {approx = true} : vector<8x1xf32> -> vector<8x1xf32>
    %34 = vector.broadcast %33 : vector<8x1xf32> to vector<8x128xf32>
    %35 = arith.mulf %30, %34 : vector<8x128xf32>
    %36 = arith.truncf %30 : vector<8x128xf32> to vector<8x128xbf16>
    %cst_16 = arith.constant dense<0.000000e+00> : vector<8x128xf32>
    %37 = tpu.matmul %36, %3, %cst_16 {dimension_numbers = #tpu.dot_dimension_numbers<[1], [0], [0], [1], [0, 0, 1, 1], [], []>} : vector<8x128xbf16>, vector<128x128xbf16>, vector<8x128xf32> -> vector<8x128xf32>
    %38 = vector.broadcast %33 : vector<8x1xf32> to vector<8x128xf32>
    %39 = arith.mulf %37, %38 : vector<8x128xf32>
    %40 = arith.truncf %39 : vector<8x128xf32> to vector<8x128xbf16>
    %41 = tpu.concatenate %40, %6 in 1 : vector<8x128xbf16>, vector<8x128xbf16> -> vector<8x256xbf16>
    %c0_17 = arith.constant 0 : index
    %c0_18 = arith.constant 0 : index
    %42 = vector.load %arg6[%c0_17, %c0_18] : memref<256x128xbf16, #tpu.memory_space<vmem>>, vector<256x128xbf16>
    %cst_19 = arith.constant dense<0.000000e+00> : vector<8x128xf32>
    %43 = tpu.matmul %41, %42, %cst_19 {dimension_numbers = #tpu.dot_dimension_numbers<[1], [0], [0], [1], [0, 0, 1, 1], [], []>} : vector<8x256xbf16>, vector<256x128xbf16>, vector<8x128xf32> -> vector<8x128xf32>
    %44 = arith.negf %43 : vector<8x128xf32>
    %45 = math.exp %44 : vector<8x128xf32>
    %cst_20 = arith.constant 1.000000e+00 : f32
    %46 = vector.broadcast %cst_20 : f32 to vector<8x128xf32>
    %47 = arith.addf %46, %45 : vector<8x128xf32>
    %48 = arith.divf %46, %47 : vector<8x128xf32>
    %49 = arith.mulf %48, %1 : vector<8x128xf32>
    %c0_21 = arith.constant 0 : index
    %c0_22 = arith.constant 0 : index
    %50 = vector.load %arg7[%c0_21, %c0_22] : memref<8x128xf32, #tpu.memory_space<vmem>>, vector<8x128xf32>
    tpu.vector_store %arg7[%c0_21, %c0_22], %49 {strides = array<i32>} : memref<8x128xf32, #tpu.memory_space<vmem>>, vector<8x128xf32>,
    %c0_23 = arith.constant 0 : index
    %c0_24 = arith.constant 0 : index
    %51 = vector.load %arg8[%c0_23, %c0_24] : memref<8x128xf32, #tpu.memory_space<vmem>>, vector<8x128xf32>
    tpu.vector_store %arg8[%c0_23, %c0_24], %35 {strides = array<i32>} : memref<8x128xf32, #tpu.memory_space<vmem>>, vector<8x128xf32>,
    return
  }
  func.func @transform_0(%arg0: i32, %arg1: i32) -> (i32, i32, i32) {
    %c0_i32 = arith.constant 0 : i32
    %c0_i32_0 = arith.constant 0 : i32
    return %arg0, %arg1, %c0_i32 : i32, i32, i32
  }
  func.func @transform_1(%arg0: i32, %arg1: i32) -> (i32, i32, i32) {
    %c0_i32 = arith.constant 0 : i32
    %c0_i32_0 = arith.constant 0 : i32
    %c0_i32_1 = arith.constant 0 : i32
    return %arg0, %c0_i32, %c0_i32_0 : i32, i32, i32
  }
  func.func @transform_2(%arg0: i32, %arg1: i32) -> (i32, i32, i32) {
    %c0_i32 = arith.constant 0 : i32
    %c0_i32_0 = arith.constant 0 : i32
    %c0_i32_1 = arith.constant 0 : i32
    return %arg0, %c0_i32, %c0_i32_0 : i32, i32, i32
  }
  func.func @transform_3(%arg0: i32, %arg1: i32) -> (i32, i32) {
    %c0_i32 = arith.constant 0 : i32
    %c0_i32_0 = arith.constant 0 : i32
    %c0_i32_1 = arith.constant 0 : i32
    return %c0_i32, %c0_i32_0 : i32, i32
  }
  func.func @transform_4(%arg0: i32, %arg1: i32) -> (i32, i32) {
    %c0_i32 = arith.constant 0 : i32
    %c0_i32_0 = arith.constant 0 : i32
    %c0_i32_1 = arith.constant 0 : i32
    return %c0_i32, %c0_i32_0 : i32, i32
  }
  func.func @transform_5(%arg0: i32, %arg1: i32) -> (i32, i32) {
    %c0_i32 = arith.constant 0 : i32
    return %arg1, %arg0 : i32, i32
  }
  func.func @transform_6(%arg0: i32, %arg1: i32) -> (i32, i32) {
    %c0_i32 = arith.constant 0 : i32
    return %arg1, %arg0 : i32, i32
  }
}

module attributes {stable_mosaic.version = 11 : i64} {
  func.func @_global_self_attn_kernel(%arg0: i32, %arg1: i32, %arg2: memref<1x8x128xf32, #tpu.memory_space<vmem>>, %arg3: memref<1x128x128xbf16, #tpu.memory_space<vmem>>, %arg4: memref<1x1x128xi32, #tpu.memory_space<vmem>>, %arg5: memref<128x128xbf16, #tpu.memory_space<vmem>>, %arg6: memref<256x128xbf16, #tpu.memory_space<vmem>>, %arg7: memref<8x128xf32, #tpu.memory_space<vmem>>, %arg8: memref<8x128xf32, #tpu.memory_space<vmem>>) attributes {dimension_semantics = [#tpu.dimension_semantics<parallel>, #tpu.dimension_semantics<parallel>], iteration_bounds = array<i64: 2, 1>, scalar_prefetch = 0 : i64, scratch_operands = 0 : i64, tpu.core_type = #tpu.core_type<tc>, window_params = [{transform_indices = @transform_0, window_bounds = array<i64: 1, 8, 128>}, {transform_indices = @transform_1, window_bounds = array<i64: 1, 128, 128>}, {transform_indices = @transform_2, window_bounds = array<i64: 1, 1, 128>}, {pipeline_mode = #tpu.pipeline_mode<synchronous>, transform_indices = @transform_3, window_bounds = array<i64: 128, 128>}, {pipeline_mode = #tpu.pipeline_mode<synchronous>, transform_indices = @transform_4, window_bounds = array<i64: 256, 128>}, {transform_indices = @transform_5, window_bounds = array<i64: 8, 128>}, {transform_indices = @transform_6, window_bounds = array<i64: 8, 128>}]} {
    %c0 = arith.constant 0 : index
    %c0_0 = arith.constant 0 : index
    %c0_1 = arith.constant 0 : index
    %0 = vector.load %arg2[%c0, %c0_0, %c0_1] : memref<1x8x128xf32, #tpu.memory_space<vmem>>, vector<1x8x128xf32>
    %1 = vector.shape_cast %0 : vector<1x8x128xf32> to vector<8x128xf32>
    %c0_2 = arith.constant 0 : index
    %c0_3 = arith.constant 0 : index
    %c0_4 = arith.constant 0 : index
    %2 = vector.load %arg3[%c0_2, %c0_3, %c0_4] : memref<1x128x128xbf16, #tpu.memory_space<vmem>>, vector<1x128x128xbf16>
    %3 = vector.shape_cast %2 : vector<1x128x128xbf16> to vector<128x128xbf16>
    %c0_5 = arith.constant 0 : index
    %c0_6 = arith.constant 0 : index
    %c0_7 = arith.constant 0 : index
    %4 = vector.load %arg4[%c0_5, %c0_6, %c0_7] : memref<1x1x128xi32, #tpu.memory_space<vmem>>, vector<1x1x128xi32>
    %5 = vector.shape_cast %4 : vector<1x1x128xi32> to vector<1x128xi32>
    %6 = arith.truncf %1 : vector<8x128xf32> to vector<8x128xbf16>
    %c0_8 = arith.constant 0 : index
    %c0_9 = arith.constant 0 : index
    %7 = vector.load %arg5[%c0_8, %c0_9] : memref<128x128xbf16, #tpu.memory_space<vmem>>, vector<128x128xbf16>
    %cst = arith.constant dense<0.000000e+00> : vector<8x128xf32>
    %8 = tpu.matmul %6, %7, %cst {dimension_numbers = #tpu.dot_dimension_numbers<[1], [0], [0], [1], [0, 0, 1, 1], [], []>} : vector<8x128xbf16>, vector<128x128xbf16>, vector<8x128xf32> -> vector<8x128xf32>
    %9 = arith.truncf %8 : vector<8x128xf32> to vector<8x128xbf16>
    %cst_10 = arith.constant dense<0.000000e+00> : vector<8x128xf32>
    %10 = tpu.matmul %9, %3, %cst_10 {dimension_numbers = #tpu.dot_dimension_numbers<[1], [1], [0], [0], [0, 0, 1, 0], [], []>} : vector<8x128xbf16>, vector<128x128xbf16>, vector<8x128xf32> -> vector<8x128xf32>
    %11 = tpu.iota {dimensions = array<i32: 1>} : vector<8x128xi32>
    %c8_i32 = arith.constant 8 : i32
    %12 = arith.muli %arg1, %c8_i32 : i32
    %13 = tpu.iota {dimensions = array<i32: 0>} : vector<8x1xi32>
    %14 = vector.broadcast %12 : i32 to vector<8x1xi32>
    %15 = arith.addi %14, %13 : vector<8x1xi32>
    %c0_i32 = arith.constant 0 : i32
    %16 = vector.broadcast %c0_i32 : i32 to vector<1x128xi32>
    %17 = arith.cmpi sgt, %5, %16 : vector<1x128xi32>
    %18 = vector.broadcast %15 : vector<8x1xi32> to vector<8x128xi32>
    %19 = arith.cmpi ne, %11, %18 : vector<8x128xi32>
    %20 = vector.broadcast %17 : vector<1x128xi1> to vector<8x128xi1>
    %21 = arith.andi %20, %19 : vector<8x128xi1>
    %cst_11 = arith.constant 9.99999984E+17 : f32
    %22 = vector.broadcast %cst_11 : f32 to vector<8x128xf32>
    %23 = arith.select %21, %10, %22 : vector<8x128xi1>, vector<8x128xf32>
    %c8_i32_12 = arith.constant 8 : i32
    %24 = vector.broadcast %c8_i32_12 : i32 to vector<8x128xi32>
    %25 = arith.cmpi slt, %11, %24 : vector<8x128xi32>
    %cst_13 = arith.constant -1.000000e+30 : f32
    %26 = vector.broadcast %cst_13 : f32 to vector<8x128xf32>
    %27 = arith.select %25, %23, %26 : vector<8x128xi1>, vector<8x128xf32>
    %cst_14 = arith.constant 9.99999984E+17 : f32
    %28 = vector.broadcast %cst_14 : f32 to vector<8x128xf32>
    %29 = arith.subf %27, %28 : vector<8x128xf32>
    %30 = math.exp %29 : vector<8x128xf32>
    %cst_15 = arith.constant dense<0.000000e+00> : vector<8xf32>
    %31 = vector.multi_reduction <add>, %30, %cst_15 [1] : vector<8x128xf32> to vector<8xf32>
    %32 = vector.shape_cast %31 : vector<8xf32> to vector<8x1xf32>
    %33 = tpu.reciprocal %32 {approx = true} : vector<8x1xf32> -> vector<8x1xf32>
    %34 = vector.broadcast %33 : vector<8x1xf32> to vector<8x128xf32>
    %35 = arith.mulf %30, %34 : vector<8x128xf32>
    %36 = arith.truncf %30 : vector<8x128xf32> to vector<8x128xbf16>
    %cst_16 = arith.constant dense<0.000000e+00> : vector<8x128xf32>
    %37 = tpu.matmul %36, %3, %cst_16 {dimension_numbers = #tpu.dot_dimension_numbers<[1], [0], [0], [1], [0, 0, 1, 1], [], []>} : vector<8x128xbf16>, vector<128x128xbf16>, vector<8x128xf32> -> vector<8x128xf32>
    %38 = vector.broadcast %33 : vector<8x1xf32> to vector<8x128xf32>
    %39 = arith.mulf %37, %38 : vector<8x128xf32>
    %40 = arith.truncf %39 : vector<8x128xf32> to vector<8x128xbf16>
    %41 = tpu.concatenate %40, %6 in 1 : vector<8x128xbf16>, vector<8x128xbf16> -> vector<8x256xbf16>
    %c0_17 = arith.constant 0 : index
    %c0_18 = arith.constant 0 : index
    %42 = vector.load %arg6[%c0_17, %c0_18] : memref<256x128xbf16, #tpu.memory_space<vmem>>, vector<256x128xbf16>
    %cst_19 = arith.constant dense<0.000000e+00> : vector<8x128xf32>
    %43 = tpu.matmul %41, %42, %cst_19 {dimension_numbers = #tpu.dot_dimension_numbers<[1], [0], [0], [1], [0, 0, 1, 1], [], []>} : vector<8x256xbf16>, vector<256x128xbf16>, vector<8x128xf32> -> vector<8x128xf32>
    %44 = arith.negf %43 : vector<8x128xf32>
    %45 = math.exp %44 : vector<8x128xf32>
    %cst_20 = arith.constant 1.000000e+00 : f32
    %46 = vector.broadcast %cst_20 : f32 to vector<8x128xf32>
    %47 = arith.addf %46, %45 : vector<8x128xf32>
    %48 = arith.divf %46, %47 : vector<8x128xf32>
    %49 = arith.mulf %48, %1 : vector<8x128xf32>
    %c0_21 = arith.constant 0 : index
    %c0_22 = arith.constant 0 : index
    %50 = vector.load %arg7[%c0_21, %c0_22] : memref<8x128xf32, #tpu.memory_space<vmem>>, vector<8x128xf32>
    tpu.vector_store %arg7[%c0_21, %c0_22], %49 {strides = array<i32>} : memref<8x128xf32, #tpu.memory_space<vmem>>, vector<8x128xf32>,
    %c0_23 = arith.constant 0 : index
    %c0_24 = arith.constant 0 : index
    %51 = vector.load %arg8[%c0_23, %c0_24] : memref<8x128xf32, #tpu.memory_space<vmem>>, vector<8x128xf32>
    tpu.vector_store %arg8[%c0_23, %c0_24], %35 {strides = array<i32>} : memref<8x128xf32, #tpu.memory_space<vmem>>, vector<8x128xf32>,
    return
  }
  func.func @transform_0(%arg0: i32, %arg1: i32) -> (i32, i32, i32) {
    %c0_i32 = arith.constant 0 : i32
    %c0_i32_0 = arith.constant 0 : i32
    return %arg0, %arg1, %c0_i32 : i32, i32, i32
  }
  func.func @transform_1(%arg0: i32, %arg1: i32) -> (i32, i32, i32) {
    %c0_i32 = arith.constant 0 : i32
    %c0_i32_0 = arith.constant 0 : i32
    %c0_i32_1 = arith.constant 0 : i32
    return %arg0, %c0_i32, %c0_i32_0 : i32, i32, i32
  }
  func.func @transform_2(%arg0: i32, %arg1: i32) -> (i32, i32, i32) {
    %c0_i32 = arith.constant 0 : i32
    %c0_i32_0 = arith.constant 0 : i32
    %c0_i32_1 = arith.constant 0 : i32
    return %arg0, %c0_i32, %c0_i32_0 : i32, i32, i32
  }
  func.func @transform_3(%arg0: i32, %arg1: i32) -> (i32, i32) {
    %c0_i32 = arith.constant 0 : i32
    %c0_i32_0 = arith.constant 0 : i32
    %c0_i32_1 = arith.constant 0 : i32
    return %c0_i32, %c0_i32_0 : i32, i32
  }
  func.func @transform_4(%arg0: i32, %arg1: i32) -> (i32, i32) {
    %c0_i32 = arith.constant 0 : i32
    %c0_i32_0 = arith.constant 0 : i32
    %c0_i32_1 = arith.constant 0 : i32
    return %c0_i32, %c0_i32_0 : i32, i32
  }
  func.func @transform_5(%arg0: i32, %arg1: i32) -> (i32, i32) {
    %c0_i32 = arith.constant 0 : i32
    return %arg1, %arg0 : i32, i32
  }
  func.func @transform_6(%arg0: i32, %arg1: i32) -> (i32, i32) {
    %c0_i32 = arith.constant 0 : i32
    return %arg1, %arg0 : i32, i32
  }
}

</mosaic_0001>

<llo_original>
// kernel: tpu_custom_call.1
$region0: #{tpu_custom_call.1}
  #allocation0 [shape = 'u32[]', space=smem, size = 0x4, offset = 0x4, fixed_abs, tag = 'smem constant byte address 0x4 - core index']
  #allocation1 [shape = 'u32[144,128]{1,0:T(1,128)}', space=vmem, size = 0x12000, scoped, tag = 'internal scratch']
  %s0 = inlined_call_operand.hbm [shape: f32[2,8,128], index: 0, kind: input, shape index: {}]
  %s1 = inlined_call_operand.hbm [shape: bf16[2,128,128], index: 1, kind: input, shape index: {}]
  %s2 = inlined_call_operand.vmem [shape: s32[2,1,128], index: 2, kind: input, shape index: {}]
  %s3 = inlined_call_operand.hbm [shape: bf16[128,128], index: 3, kind: input, shape index: {}]
  %s4 = inlined_call_operand.hbm [shape: bf16[256,128], index: 4, kind: input, shape index: {}]
  %s5 = inlined_call_operand.hbm [shape: f32[8,256], index: 5, kind: output, shape index: {0}]
  %s6 = inlined_call_operand.hbm [shape: f32[8,256], index: 6, kind: output, shape index: {1}]
  %7 = xla_tuple %s5, %s6
  %s8 = sld [smem:[#allocation0]]
  $region77: #{tpu_custom_call.1} parent=0
    _
  %s10 = ssub.s32 1, %s8
  %s11 = scalar_select 0, %s10, %s8
  $region1: #{tpu_custom_call.1} parent=0
    #allocation2 [shape = 'u8[8192]{0}', space=vmem, size = 0x2000, scoped, tag = 'input window, operand 0']
    #allocation3 [shape = 's32[2]{0}', space=sflag, size = 0x8, scoped, tag = 'scoped memory for tpu_custom_call.1']
    #allocation4 [shape = 's32[2]{0}', space=sflag, size = 0x8, scoped, tag = 'scoped memory for tpu_custom_call.1']
    #allocation5 [shape = 'u8[32768]{0}', space=vmem, size = 0x8000, scoped, tag = 'input window, operand 1, single buffered']
    #allocation6 [shape = 's32[1]{0}', space=sflag, size = 0x4, scoped, tag = 'scoped memory for tpu_custom_call.1']
    #allocation7 [shape = 'u8[32768]{0}', space=vmem, size = 0x8000, scoped, tag = 'input window, operand 3, single buffered']
    #allocation8 [shape = 'u8[65536]{0}', space=vmem, size = 0x10000, scoped, tag = 'input window, operand 4, single buffered']
    #allocation9 [shape = 's32[1]{0}', space=sflag, size = 0x4, scoped, tag = 'scoped memory for tpu_custom_call.1']
    #allocation10 [shape = 'u8[8192]{0}', space=vmem, size = 0x2000, scoped, tag = 'output window, operand 0']
    #allocation11 [shape = 'u8[8192]{0}', space=vmem, size = 0x2000, scoped, tag = 'output window, operand 1']
    #allocation12 [shape = 's32[2]{0}', space=sflag, size = 0x8, scoped, tag = 'scoped memory for tpu_custom_call.1']
    %12 = vsyncpa [#allocation3], 0
    %s13 = scalar_lea.sflag [#allocation3], 1
    %14 = vsyncpa %s13, 0
    %15 = vsyncpa [#allocation6], 0
    %16 = vsyncpa [#allocation9], 0
    %17 = vsyncpa [#allocation4], 0
    %s18 = scalar_lea.sflag [#allocation4], 1
    %19 = vsyncpa %s18, 0
    %20 = vsyncpa [#allocation12], 0
    %s21 = scalar_lea.sflag [#allocation12], 1
    %22 = vsyncpa %s21, 0
    loop: start=0, step=1, limit=4
    $region2: #{tpu_custom_call.1} parent=1 // loop_pre_header
      _
    $region3: #{tpu_custom_call.1} parent=1 // loop_header
      %s24 = sphi 0, %s28
      %p25 = scmp.ge.s32.totalorder %s24, 4
      %s31 = sphi 0, %s43
      %s32 = sphi 0, %s39
      %s33 = sphi 0, %s31
      %s34 = sphi 0, %s32
      %s35 = sphi 0, %s33
      %s36 = sphi 0, %s34
      %s48 = sphi 0, %s50
      %s51 = sphi 0, %s48
      %s52 = sphi 0, %s51
      %s68 = sphi 0, %s52
      %s74 = sphi 0, %s76
      %s77 = sphi 0, %s74
      %s78 = sphi 0, %s77
      %s94 = sphi 0, %s78
      %s100 = sphi 0, %s102
      %s103 = sphi 0, %s100
      %s104 = sphi 0, %s103
      %s120 = sphi 0, %s104
      %s124 = sphi 0, %s124
      %s126 = sphi 0, %s124
      %s127 = sphi 0, %s126
      %s141 = sphi 0, %s127
      %s145 = sphi 0, %s145
      %s147 = sphi 0, %s145
      %s148 = sphi 0, %s147
      %s162 = sphi 0, %s148
      %s170 = sphi 0, %s172
      %s173 = sphi 0, %s170
      %s174 = sphi 0, %s173
      %s190 = sphi 0, %s174
      %s198 = sphi 0, %s200
      %s201 = sphi 0, %s198
      %s202 = sphi 0, %s201
      %s218 = sphi 0, %s202
    $region4: #{tpu_custom_call.1} parent=1 // loop_header_branch
      %27 = sbr.rel (%p25) target = $region8
    $region5: #{tpu_custom_call.1} parent=1 // loop_body
      %s29 = ssub.s32 %s24, 1
      %s30 = ssub.s32 %s24, 2
      %s37 = sadd.s32 1, %s32
      %p38 = scmp.ge.s32.totalorder %s37, 1
      %s39 = scalar_select %p38, 0, %s37
      %s40 = sadd.s32 1, %s31
      %s41 = scalar_select %p38, %s40, %s31
      %p42 = scmp.ge.s32.totalorder %s41, 2
      %s43 = scalar_select %p42, 0, %s41
      %s44 = ssub.s32 %s31, %s43
      %s45 = ssub.s32 %s32, %s39
      %s46 = sor.u32 %s44, %s45
      %p47 = scmp.eq.s32.totalorder %s46, 0
      %s49 = sadd.s32 %s48, 1
      %s50 = scalar_select %p47, %s48, %s49
      %p53 = pneg %p47
      %p54 = scmp.eq.s32.totalorder %s24, 1
      %p55 = por %p53, %p54
      %p56 = scmp.ne.s32.totalorder %s48, %s51
      %p57 = scmp.eq.s32.totalorder %s24, 0
      %p58 = por %p56, %p57
      %p59 = scmp.ne.s32.totalorder %s48, %s51
      %p60 = scmp.eq.s32.totalorder %s29, 1
      %p61 = por %p59, %p60
      %p62 = scmp.ne.s32.totalorder %s51, %s52
      %p63 = scmp.eq.s32.totalorder %s29, 0
      %p64 = por %p62, %p63
      %p65 = scmp.ne.s32.totalorder %s51, %s52
      %p66 = scmp.eq.s32.totalorder %s30, 1
      %p67 = por %p65, %p66
      %p69 = scmp.ne.s32.totalorder %s52, %s68
      %p70 = scmp.eq.s32.totalorder %s30, 0
      %p71 = por %p69, %p70
      %s72 = ssub.s32 %s31, %s43
      %p73 = scmp.eq.s32.totalorder %s72, 0
      %s75 = sadd.s32 %s74, 1
      %s76 = scalar_select %p73, %s74, %s75
      %p79 = pneg %p73
      %p80 = scmp.eq.s32.totalorder %s24, 1
      %p81 = por %p79, %p80
      %p82 = scmp.ne.s32.totalorder %s74, %s77
      %p83 = scmp.eq.s32.totalorder %s24, 0
      %p84 = por %p82, %p83
      %p85 = scmp.ne.s32.totalorder %s74, %s77
      %p86 = scmp.eq.s32.totalorder %s29, 1
      %p87 = por %p85, %p86
      %p88 = scmp.ne.s32.totalorder %s77, %s78
      %p89 = scmp.eq.s32.totalorder %s29, 0
      %p90 = por %p88, %p89
      %p91 = scmp.ne.s32.totalorder %s77, %s78
      %p92 = scmp.eq.s32.totalorder %s30, 1
      %p93 = por %p91, %p92
      %p95 = scmp.ne.s32.totalorder %s78, %s94
      %p96 = scmp.eq.s32.totalorder %s30, 0
      %p97 = por %p95, %p96
      %s98 = ssub.s32 %s31, %s43
      %p99 = scmp.eq.s32.totalorder %s98, 0
      %s101 = sadd.s32 %s100, 1
      %s102 = scalar_select %p99, %s100, %s101
      %p105 = pneg %p99
      %p106 = scmp.eq.s32.totalorder %s24, 1
      %p107 = por %p105, %p106
      %p108 = scmp.ne.s32.totalorder %s100, %s103
      %p109 = scmp.eq.s32.totalorder %s24, 0
      %p110 = por %p108, %p109
      %p111 = scmp.ne.s32.totalorder %s100, %s103
      %p112 = scmp.eq.s32.totalorder %s29, 1
      %p113 = por %p111, %p112
      %p114 = scmp.ne.s32.totalorder %s103, %s104
      %p115 = scmp.eq.s32.totalorder %s29, 0
      %p116 = por %p114, %p115
      %p117 = scmp.ne.s32.totalorder %s103, %s104
      %p118 = scmp.eq.s32.totalorder %s30, 1
      %p119 = por %p117, %p118
      %p121 = scmp.ne.s32.totalorder %s104, %s120
      %p122 = scmp.eq.s32.totalorder %s30, 0
      %p123 = por %p121, %p122
      %s125 = sadd.s32 %s124, 1
      %p128 = scmp.eq.s32.totalorder %s24, 1
      %p129 = scmp.ne.s32.totalorder %s124, %s126
      %p130 = scmp.eq.s32.totalorder %s24, 0
      %p131 = por %p129, %p130
      %p132 = scmp.ne.s32.totalorder %s124, %s126
      %p133 = scmp.eq.s32.totalorder %s29, 1
      %p134 = por %p132, %p133
      %p135 = scmp.ne.s32.totalorder %s126, %s127
      %p136 = scmp.eq.s32.totalorder %s29, 0
      %p137 = por %p135, %p136
      %p138 = scmp.ne.s32.totalorder %s126, %s127
      %p139 = scmp.eq.s32.totalorder %s30, 1
      %p140 = por %p138, %p139
      %p142 = scmp.ne.s32.totalorder %s127, %s141
      %p143 = scmp.eq.s32.totalorder %s30, 0
      %p144 = por %p142, %p143
      %s146 = sadd.s32 %s145, 1
      %p149 = scmp.eq.s32.totalorder %s24, 1
      %p150 = scmp.ne.s32.totalorder %s145, %s147
      %p151 = scmp.eq.s32.totalorder %s24, 0
      %p152 = por %p150, %p151
      %p153 = scmp.ne.s32.totalorder %s145, %s147
      %p154 = scmp.eq.s32.totalorder %s29, 1
      %p155 = por %p153, %p154
      %p156 = scmp.ne.s32.totalorder %s147, %s148
      %p157 = scmp.eq.s32.totalorder %s29, 0
      %p158 = por %p156, %p157
      %p159 = scmp.ne.s32.totalorder %s147, %s148
      %p160 = scmp.eq.s32.totalorder %s30, 1
      %p161 = por %p159, %p160
      %p163 = scmp.ne.s32.totalorder %s148, %s162
      %p164 = scmp.eq.s32.totalorder %s30, 0
      %p165 = por %p163, %p164
      %s166 = ssub.s32 %s32, %s39
      %s167 = ssub.s32 %s31, %s43
      %s168 = sor.u32 %s166, %s167
      %p169 = scmp.eq.s32.totalorder %s168, 0
      %s171 = sadd.s32 %s170, 1
      %s172 = scalar_select %p169, %s170, %s171
      %p175 = pneg %p169
      %p176 = scmp.eq.s32.totalorder %s24, 1
      %p177 = por %p175, %p176
      %p178 = scmp.ne.s32.totalorder %s170, %s173
      %p179 = scmp.eq.s32.totalorder %s24, 0
      %p180 = por %p178, %p179
      %p181 = scmp.ne.s32.totalorder %s170, %s173
      %p182 = scmp.eq.s32.totalorder %s29, 1
      %p183 = por %p181, %p182
      %p184 = scmp.ne.s32.totalorder %s173, %s174
      %p185 = scmp.eq.s32.totalorder %s29, 0
      %p186 = por %p184, %p185
      %p187 = scmp.ne.s32.totalorder %s173, %s174
      %p188 = scmp.eq.s32.totalorder %s30, 1
      %p189 = por %p187, %p188
      %p191 = scmp.ne.s32.totalorder %s174, %s190
      %p192 = scmp.eq.s32.totalorder %s30, 0
      %p193 = por %p191, %p192
      %s194 = ssub.s32 %s32, %s39
      %s195 = ssub.s32 %s31, %s43
      %s196 = sor.u32 %s194, %s195
      %p197 = scmp.eq.s32.totalorder %s196, 0
      %s199 = sadd.s32 %s198, 1
      %s200 = scalar_select %p197, %s198, %s199
      %p203 = pneg %p197
      %p204 = scmp.eq.s32.totalorder %s24, 1
      %p205 = por %p203, %p204
      %p206 = scmp.ne.s32.totalorder %s198, %s201
      %p207 = scmp.eq.s32.totalorder %s24, 0
      %p208 = por %p206, %p207
      %p209 = scmp.ne.s32.totalorder %s198, %s201
      %p210 = scmp.eq.s32.totalorder %s29, 1
      %p211 = por %p209, %p210
      %p212 = scmp.ne.s32.totalorder %s201, %s202
      %p213 = scmp.eq.s32.totalorder %s29, 0
      %p214 = por %p212, %p213
      %p215 = scmp.ne.s32.totalorder %s201, %s202
      %p216 = scmp.eq.s32.totalorder %s30, 1
      %p217 = por %p215, %p216
      %p219 = scmp.ne.s32.totalorder %s202, %s218
      %p220 = scmp.eq.s32.totalorder %s30, 0
      %p221 = por %p219, %p220
      %p222 = scmp.le.s32.totalorder 1, %s24
      %p223 = scmp.lt.s32.totalorder %s24, 3
      %p224 = pnand %p222, %p223
      %p225 = pneg %p224
      // Predicated region
      $region9: #{tpu_custom_call.1} parent=5 // pred_check
        _
      $region10: #{tpu_custom_call.1} parent=5 // pred_check_branch
        %227 = sbr.rel (%p224) target = $region12
      $region11: #{tpu_custom_call.1} parent=5 // pred_region
        %s228 = ssub.s32 %s24, 1
        // Predicated region
        $region13: #{tpu_custom_call.1} parent=11 // pred_check
          %p229 = pneg %p90
        $region14: #{tpu_custom_call.1} parent=11 // pred_check_branch
          %231 = sbr.rel (%p229) target = $region16
        $region15: #{tpu_custom_call.1} parent=11 // pred_region
          %s233 = ssub.s32 1024, 1024
          %234 = vsyncadd [#allocation6], %s233
          %s235 = smul.addr %s33, 16
          %s236 = smul.addr %s235, 64
          %s237 = scalar_lea.hbm %s1, %s236
          %s238 = sshll.u32 [#allocation5], 4
          %s239 = int_to_ptr.vmem [resolvable:$true] %s238
          %244 = dma.hbm_to_vmem [thread:$0]  %s237, 1024, %s239, [#allocation6], 64, 64, 4
        $region16: #{tpu_custom_call.1} parent=11 // pred_fallthru
          _
        // Predicated region
        $region17: #{tpu_custom_call.1} parent=11 // pred_check
          %p245 = pneg %p137
        $region18: #{tpu_custom_call.1} parent=11 // pred_check_branch
          %247 = sbr.rel (%p245) target = $region20
        $region19: #{tpu_custom_call.1} parent=11 // pred_region
          %s249 = ssub.s32 1024, 1024
          %250 = vsyncadd [#allocation6], %s249
          %s251 = sshll.u32 [#allocation7], 4
          %s252 = int_to_ptr.vmem [resolvable:$true] %s251
          %257 = dma.hbm_to_vmem [thread:$0]  %s3, 1024, %s252, [#allocation6], 64, 64, 4
        $region20: #{tpu_custom_call.1} parent=11 // pred_fallthru
          _
        // Predicated region
        $region21: #{tpu_custom_call.1} parent=11 // pred_check
          %p258 = pneg %p158
        $region22: #{tpu_custom_call.1} parent=11 // pred_check_branch
          %260 = sbr.rel (%p258) target = $region24
        $region23: #{tpu_custom_call.1} parent=11 // pred_region
          %s262 = ssub.s32 2048, 2048
          %263 = vsyncadd [#allocation9], %s262
          %s264 = sshll.u32 [#allocation8], 4
          %s265 = int_to_ptr.vmem [resolvable:$true] %s264
          %270 = dma.hbm_to_vmem [thread:$0]  %s4, 2048, %s265, [#allocation9], 64, 64, 4
        $region24: #{tpu_custom_call.1} parent=11 // pred_fallthru
          _
      $region12: #{tpu_custom_call.1} parent=5 // pred_fallthru
        _
      %p271 = scmp.lt.s32.totalorder %s24, 2
      // Predicated region
      $region25: #{tpu_custom_call.1} parent=5 // pred_check
        %p272 = pneg %p271
      $region26: #{tpu_custom_call.1} parent=5 // pred_check_branch
        %274 = sbr.rel (%p272) target = $region28
      $region27: #{tpu_custom_call.1} parent=5 // pred_region
        // Predicated region
        $region29: #{tpu_custom_call.1} parent=27 // pred_check
          %p275 = pneg %p58
        $region30: #{tpu_custom_call.1} parent=27 // pred_check_branch
          %277 = sbr.rel (%p275) target = $region32
        $region31: #{tpu_custom_call.1} parent=27 // pred_region
          %s278 = sand.u32 %s48, 1
          %s279 = scalar_lea.sflag [#allocation3], %s278
          %s280 = sand.u32 %s48, 1
          %s281 = smul.addr %s280, 8
          %s282 = scalar_lea.vmem [#allocation2], %s281
          %s284 = ssub.s32 128, 128
          %285 = vsyncadd %s279, %s284
          %s286 = sadd.s32 %s32, %s31
          %s287 = smul.addr %s286, 128
          %s288 = scalar_lea.hbm %s0, %s287
          %s290 = sshll.u32 %s282, 4
          %s291 = int_to_ptr.vmem [resolvable:$true] %s290
          %293 = dma.hbm_to_vmem [thread:$0]  %s288, 128, %s291, %s279
        $region32: #{tpu_custom_call.1} parent=27 // pred_fallthru
          _
        // Predicated region
        $region33: #{tpu_custom_call.1} parent=27 // pred_check
          %p294 = pneg %p110
        $region34: #{tpu_custom_call.1} parent=27 // pred_check_branch
          %296 = sbr.rel (%p294) target = $region36
        $region35: #{tpu_custom_call.1} parent=27 // pred_region
          %p297 = scmp.lt.s32.totalorder %s31, 1
          %s298 = scalar_select %p297, %s31, 1
          %s299 = scalar_lea.vmem %s2, %s298
        $region36: #{tpu_custom_call.1} parent=27 // pred_fallthru
          _
      $region28: #{tpu_custom_call.1} parent=5 // pred_fallthru
        _
      %p300 = scmp.le.s32.totalorder 1, %s24
      %p301 = scmp.lt.s32.totalorder %s24, 3
      %p302 = pnand %p300, %p301
      %p303 = pneg %p302
      // Predicated region
      $region37: #{tpu_custom_call.1} parent=5 // pred_check
        _
      $region38: #{tpu_custom_call.1} parent=5 // pred_check_branch
        %305 = sbr.rel (%p302) target = $region40
      $region39: #{tpu_custom_call.1} parent=5 // pred_region
        %s306 = ssub.s32 %s24, 1
        %s307 = sand.u32 %s51, 1
        %s308 = scalar_lea.sflag [#allocation3], %s307
        %s309 = sand.u32 %s51, 1
        %s310 = smul.addr %s309, 8
        %s311 = scalar_lea.vmem [#allocation2], %s310
        // Predicated region
        $region41: #{tpu_custom_call.1} parent=39 // pred_check
          %p312 = pneg %p64
        $region42: #{tpu_custom_call.1} parent=39 // pred_check_branch
          %314 = sbr.rel (%p312) target = $region44
        $region43: #{tpu_custom_call.1} parent=39 // pred_region
          %315 = dma.done %s308, 128
        $region44: #{tpu_custom_call.1} parent=39 // pred_fallthru
          _
        // Predicated region
        $region45: #{tpu_custom_call.1} parent=39 // pred_check
          %p316 = pneg %p90
        $region46: #{tpu_custom_call.1} parent=39 // pred_check_branch
          %318 = sbr.rel (%p316) target = $region48
        $region47: #{tpu_custom_call.1} parent=39 // pred_region
          %319 = dma.done [#allocation6], 1024
        $region48: #{tpu_custom_call.1} parent=39 // pred_fallthru
          _
        // Predicated region
        $region49: #{tpu_custom_call.1} parent=39 // pred_check
          %p320 = pneg %p137
        $region50: #{tpu_custom_call.1} parent=39 // pred_check_branch
          %322 = sbr.rel (%p320) target = $region52
        $region51: #{tpu_custom_call.1} parent=39 // pred_region
          %323 = dma.done [#allocation6], 1024
        $region52: #{tpu_custom_call.1} parent=39 // pred_fallthru
          _
        // Predicated region
        $region53: #{tpu_custom_call.1} parent=39 // pred_check
          %p324 = pneg %p158
        $region54: #{tpu_custom_call.1} parent=39 // pred_check_branch
          %326 = sbr.rel (%p324) target = $region56
        $region55: #{tpu_custom_call.1} parent=39 // pred_region
          %327 = dma.done [#allocation9], 2048
        $region56: #{tpu_custom_call.1} parent=39 // pred_fallthru
          _
        %s328 = sand.u32 %s51, 1
        %s329 = scalar_lea.sflag [#allocation3], %s328
        %s330 = sand.u32 %s51, 1
        %s331 = smul.addr %s330, 8
        %s332 = scalar_lea.vmem [#allocation2], %s331
        %p333 = pneg %p64
        %p334 = pneg %p61
        %p335 = pneg %p90
        %p336 = pneg %p87
        %p337 = scmp.lt.s32.totalorder %s33, 1
        %s338 = scalar_select %p337, %s33, 1
        %s339 = scalar_lea.vmem %s2, %s338
        %p340 = pneg %p116
        %p341 = pneg %p113
        %p342 = pneg %p137
        %p343 = pneg %p134
        %p344 = pneg %p158
        %p345 = pneg %p155
        %p346 = pneg %p186
        %p347 = pneg %p183
        %s348 = sand.u32 %s173, 1
        %s349 = scalar_lea.sflag [#allocation4], %s348
        %s350 = sand.u32 %s173, 1
        %s351 = smul.addr %s350, 8
        %s352 = scalar_lea.vmem [#allocation10], %s351
        %p353 = pneg %p214
        %p354 = pneg %p211
        %s355 = sand.u32 %s201, 1
        %s356 = scalar_lea.sflag [#allocation12], %s355
        %s357 = sand.u32 %s201, 1
        %s358 = smul.addr %s357, 8
        %s359 = scalar_lea.vmem [#allocation11], %s358
        %p360 = scmp.lt.s32.totalorder %s33, 1
        %s361 = scalar_select %p360, %s33, 1
        %s362 = scalar_lea.vmem %s2, %s361
        %v364 = vld [vmem:[%s311] sm:$0xff]
        %v365 = vld [vmem:[#allocation5] sm:$0xf]
        %v366 = vld [vmem:[#allocation5 + $0x4] sm:$0xf]
        %v367 = vld [vmem:[#allocation5 + $0x8] sm:$0xf]
        %v368 = vld [vmem:[#allocation5 + $0xc] sm:$0xf]
        %v369 = vld [vmem:[#allocation5 + $0x10] sm:$0xf]
        %v370 = vld [vmem:[#allocation5 + $0x14] sm:$0xf]
        %v371 = vld [vmem:[#allocation5 + $0x18] sm:$0xf]
        %v372 = vld [vmem:[#allocation5 + $0x1c] sm:$0xf]
        %v373 = vld [vmem:[#allocation5 + $0x20] sm:$0xf]
        %v374 = vld [vmem:[#allocation5 + $0x24] sm:$0xf]
        %v375 = vld [vmem:[#allocation5 + $0x28] sm:$0xf]
        %v376 = vld [vmem:[#allocation5 + $0x2c] sm:$0xf]
        %v377 = vld [vmem:[#allocation5 + $0x30] sm:$0xf]
        %v378 = vld [vmem:[#allocation5 + $0x34] sm:$0xf]
        %v379 = vld [vmem:[#allocation5 + $0x38] sm:$0xf]
        %v380 = vld [vmem:[#allocation5 + $0x3c] sm:$0xf]
        %v381 = vld [vmem:[%s362] sm:$0x1]
        %v382 = vpack.c.bf16 %v364, %v364
        %v383 = vld [vmem:[#allocation7] sm:$0xf]
        %v384 = vld [vmem:[#allocation7 + $0x4] sm:$0xf]
        %v385 = vld [vmem:[#allocation7 + $0x8] sm:$0xf]
        %v386 = vld [vmem:[#allocation7 + $0xc] sm:$0xf]
        %v387 = vld [vmem:[#allocation7 + $0x10] sm:$0xf]
        %v388 = vld [vmem:[#allocation7 + $0x14] sm:$0xf]
        %v389 = vld [vmem:[#allocation7 + $0x18] sm:$0xf]
        %v390 = vld [vmem:[#allocation7 + $0x1c] sm:$0xf]
        %v391 = vld [vmem:[#allocation7 + $0x20] sm:$0xf]
        %v392 = vld [vmem:[#allocation7 + $0x24] sm:$0xf]
        %v393 = vld [vmem:[#allocation7 + $0x28] sm:$0xf]
        %v394 = vld [vmem:[#allocation7 + $0x2c] sm:$0xf]
        %v395 = vld [vmem:[#allocation7 + $0x30] sm:$0xf]
        %v396 = vld [vmem:[#allocation7 + $0x34] sm:$0xf]
        %v397 = vld [vmem:[#allocation7 + $0x38] sm:$0xf]
        %v398 = vld [vmem:[#allocation7 + $0x3c] sm:$0xf]
        %v415 = vunpack.c.l.b16 %v383
        %v416 = vunpack.c.l.b16 %v384
        %v417 = vunpack.c.l.b16 %v385
        %v418 = vunpack.c.l.b16 %v386
        %v419 = vunpack.c.l.b16 %v387
        %v420 = vunpack.c.l.b16 %v388
        %v421 = vunpack.c.l.b16 %v389
        %v422 = vunpack.c.l.b16 %v390
        %v423 = vunpack.c.l.b16 %v391
        %v424 = vunpack.c.l.b16 %v392
        %v425 = vunpack.c.l.b16 %v393
        %v426 = vunpack.c.l.b16 %v394
        %v427 = vunpack.c.l.b16 %v395
        %v428 = vunpack.c.l.b16 %v396
        %v429 = vunpack.c.l.b16 %v397
        %v430 = vunpack.c.l.b16 %v398
        %v431 = vpack.c.b16 %v416, %v415
        %v432 = vpack.c.b16 %v418, %v417
        %v433 = vpack.c.b16 %v420, %v419
        %v434 = vpack.c.b16 %v422, %v421
        %v435 = vpack.c.b16 %v424, %v423
        %v436 = vpack.c.b16 %v426, %v425
        %v437 = vpack.c.b16 %v428, %v427
        %v438 = vpack.c.b16 %v430, %v429
        %447 = vmatprep.subr.bf16.mxu0 0
        %448 = vmatpush1.bf16.msra.mxu0 %v438
        %449 = vmatprep.subr.bf16.mxu0 0
        %450 = vmatpush1.bf16.msra.mxu0 %v437
        %451 = vmatprep.subr.bf16.mxu0 0
        %452 = vmatpush1.bf16.msra.mxu0 %v436
        %453 = vmatprep.subr.bf16.mxu0 0
        %454 = vmatpush1.bf16.msra.mxu0 %v435
        %455 = vmatprep.subr.bf16.mxu0 0
        %456 = vmatpush1.bf16.msra.mxu0 %v434
        %457 = vmatprep.subr.bf16.mxu0 0
        %458 = vmatpush1.bf16.msra.mxu0 %v433
        %459 = vmatprep.subr.bf16.mxu0 0
        %460 = vmatpush1.bf16.msra.mxu0 %v432
        %461 = vmatprep.subr.bf16.mxu0 0
        %462 = vmatpush1.bf16.msra.mxu0 %v431
        %463 = vmatprep.subr.bf16.mxu0 0
        %464 = vmatpush2.bf16.msra.mxu0 0
        %465 = vmatprep.subr.bf16.mxu0 0
        %466 = vmatpush2.bf16.msra.mxu0 0
        %467 = vmatprep.subr.bf16.mxu0 0
        %468 = vmatpush2.bf16.msra.mxu0 0
        %469 = vmatprep.subr.bf16.mxu0 0
        %470 = vmatpush2.bf16.msra.mxu0 0
        %471 = vmatprep.subr.bf16.mxu0 0
        %472 = vmatpush2.bf16.msra.mxu0 0
        %473 = vmatprep.subr.bf16.mxu0 0
        %474 = vmatpush2.bf16.msra.mxu0 0
        %475 = vmatprep.subr.bf16.mxu0 0
        %476 = vmatpush2.bf16.msra.mxu0 0
        %477 = vmatprep.subr.bf16.mxu0 0
        %478 = vmatpush2.bf16.msra.mxu0 0
        %479 = vmatprep.mubr.bf16.mxu0 0
        %480 = vmatmul.mubr.bf16.gmra.mxu0 %v382
        %v481 = vpop.f32.mrf.mxu0
        %v482 = vadd.f32 0.0, %v481
        %v483 = vpop.f32.mrf.mxu0
        %v484 = vpop.f32.mrf.mxu0
        %v485 = vpop.f32.mrf.mxu0
        %486 = vdwg.mxu0
        %v487 = vpack.c.bf16 %v482, %v482
        %v504 = vunpack.c.l.b16 %v365
        %v505 = vunpack.c.l.b16 %v366
        %v506 = vunpack.c.l.b16 %v367
        %v507 = vunpack.c.l.b16 %v368
        %v508 = vunpack.c.l.b16 %v369
        %v509 = vunpack.c.l.b16 %v370
        %v510 = vunpack.c.l.b16 %v371
        %v511 = vunpack.c.l.b16 %v372
        %v512 = vunpack.c.l.b16 %v373
        %v513 = vunpack.c.l.b16 %v374
        %v514 = vunpack.c.l.b16 %v375
        %v515 = vunpack.c.l.b16 %v376
        %v516 = vunpack.c.l.b16 %v377
        %v517 = vunpack.c.l.b16 %v378
        %v518 = vunpack.c.l.b16 %v379
        %v519 = vunpack.c.l.b16 %v380
        %v520 = vpack.c.b16 %v505, %v504
        %v521 = vpack.c.b16 %v507, %v506
        %v522 = vpack.c.b16 %v509, %v508
        %v523 = vpack.c.b16 %v511, %v510
        %v524 = vpack.c.b16 %v513, %v512
        %v525 = vpack.c.b16 %v515, %v514
        %v526 = vpack.c.b16 %v517, %v516
        %v527 = vpack.c.b16 %v519, %v518
        %536 = vmatprep.subr.bf16.mxu0 0
        %537 = vmatpush1.bf16.xpose.msra.mxu0 %v527
        %538 = vmatprep.subr.bf16.mxu0 0
        %539 = vmatpush1.bf16.xpose.msra.mxu0 %v526
        %540 = vmatprep.subr.bf16.mxu0 0
        %541 = vmatpush1.bf16.xpose.msra.mxu0 %v525
        %542 = vmatprep.subr.bf16.mxu0 0
        %543 = vmatpush1.bf16.xpose.msra.mxu0 %v524
        %544 = vmatprep.subr.bf16.mxu0 0
        %545 = vmatpush1.bf16.xpose.msra.mxu0 %v523
        %546 = vmatprep.subr.bf16.mxu0 0
        %547 = vmatpush1.bf16.xpose.msra.mxu0 %v522
        %548 = vmatprep.subr.bf16.mxu0 0
        %549 = vmatpush1.bf16.xpose.msra.mxu0 %v521
        %550 = vmatprep.subr.bf16.mxu0 0
        %551 = vmatpush1.bf16.xpose.msra.mxu0 %v520
        %552 = vmatprep.subr.bf16.mxu0 0
        %553 = vmatpush2.bf16.xpose.msra.mxu0 0
        %554 = vmatprep.subr.bf16.mxu0 0
        %555 = vmatpush2.bf16.xpose.msra.mxu0 0
        %556 = vmatprep.subr.bf16.mxu0 0
        %557 = vmatpush2.bf16.xpose.msra.mxu0 0
        %558 = vmatprep.subr.bf16.mxu0 0
        %559 = vmatpush2.bf16.xpose.msra.mxu0 0
        %560 = vmatprep.subr.bf16.mxu0 0
        %561 = vmatpush2.bf16.xpose.msra.mxu0 0
        %562 = vmatprep.subr.bf16.mxu0 0
        %563 = vmatpush2.bf16.xpose.msra.mxu0 0
        %564 = vmatprep.subr.bf16.mxu0 0
        %565 = vmatpush2.bf16.xpose.msra.mxu0 0
        %566 = vmatprep.subr.bf16.mxu0 0
        %567 = vmatpush2.bf16.xpose.msra.mxu0 0
        %568 = vmatprep.mubr.bf16.mxu0 0
        %569 = vmatmul.mubr.bf16.gmra.mxu0 %v487
        %v570 = vpop.f32.mrf.mxu0
        %v571 = vadd.f32 0.0, %v570
        %v572 = vpop.f32.mrf.mxu0
        %v573 = vpop.f32.mrf.mxu0
        %v574 = vpop.f32.mrf.mxu0
        %575 = vdwg.mxu0
        %v576 = vlaneseq
        %v577 = vand.u32 %v576, 127
        %s578 = smul.u32 %s34, 8
        %v579 = vlaneseq
        %v580 = vshrl.u32 %v579, 7
        %v581 = vstv %s578
        %v582 = vadd.s32 %v581, %v580
        %vm583 = vcmp.gt.s32.totalorder %v381, 0
        %vm584 = vcmp.ne.s32.totalorder %v577, %v582
        %v585 = vsel %vm583, 1, 0
        %v586 = vlaneseq
        %v587 = vshrl.u32 %v586, 7
        %v588 = vsub.s32 0, %v587
        %v589 = vrot.slane %v585, %v588
        %vm590 = vcmp.eq.s32.totalorder %v589, 1
        %vm591 = vmand %vm590, %vm584
        %v592 = vsel %vm591, %v571, 1e+18
        %vm593 = vcmp.lt.s32.totalorder %v577, 8
        %v594 = vsel %vm593, %v592, -1e+30
        %v595 = vsub.f32 %v594, 1e+18
        %v596 = vmul.f32 %v595, 1.442695
        %v597 = vpow.pop %v596
        %598 = vadd.xlane.f32.xlu0 %v597
        %v599 = vpop.xlane.xlu0 %598
        %v600 = vrcp.pop %v599
        %v601 = vmul.f32 %v597, %v600
        %v602 = vpack.c.bf16 %v597, %v597
        %603 = vmatprep.subr.bf16.mxu0 0
        %604 = vmatpush1.bf16.msra.mxu0 %v527
        %605 = vmatprep.subr.bf16.mxu0 0
        %606 = vmatpush1.bf16.msra.mxu0 %v526
        %607 = vmatprep.subr.bf16.mxu0 0
        %608 = vmatpush1.bf16.msra.mxu0 %v525
        %609 = vmatprep.subr.bf16.mxu0 0
        %610 = vmatpush1.bf16.msra.mxu0 %v524
        %611 = vmatprep.subr.bf16.mxu0 0
        %612 = vmatpush1.bf16.msra.mxu0 %v523
        %613 = vmatprep.subr.bf16.mxu0 0
        %614 = vmatpush1.bf16.msra.mxu0 %v522
        %615 = vmatprep.subr.bf16.mxu0 0
        %616 = vmatpush1.bf16.msra.mxu0 %v521
        %617 = vmatprep.subr.bf16.mxu0 0
        %618 = vmatpush1.bf16.msra.mxu0 %v520
        %619 = vmatprep.subr.bf16.mxu0 0
        %620 = vmatpush2.bf16.msra.mxu0 0
        %621 = vmatprep.subr.bf16.mxu0 0
        %622 = vmatpush2.bf16.msra.mxu0 0
        %623 = vmatprep.subr.bf16.mxu0 0
        %624 = vmatpush2.bf16.msra.mxu0 0
        %625 = vmatprep.subr.bf16.mxu0 0
        %626 = vmatpush2.bf16.msra.mxu0 0
        %627 = vmatprep.subr.bf16.mxu0 0
        %628 = vmatpush2.bf16.msra.mxu0 0
        %629 = vmatprep.subr.bf16.mxu0 0
        %630 = vmatpush2.bf16.msra.mxu0 0
        %631 = vmatprep.subr.bf16.mxu0 0
        %632 = vmatpush2.bf16.msra.mxu0 0
        %633 = vmatprep.subr.bf16.mxu0 0
        %634 = vmatpush2.bf16.msra.mxu0 0
        %635 = vmatprep.mubr.bf16.mxu0 0
        %636 = vmatmul.mubr.bf16.gmra.mxu0 %v602
        %v637 = vpop.f32.mrf.mxu0
        %v638 = vadd.f32 0.0, %v637
        %v639 = vpop.f32.mrf.mxu0
        %v640 = vpop.f32.mrf.mxu0
        %v641 = vpop.f32.mrf.mxu0
        %642 = vdwg.mxu0
        %v643 = vmul.f32 %v638, %v600
        %v644 = vpack.c.bf16 %v643, %v643
        %v645 = vld [vmem:[#allocation8] sm:$0xf]
        %v646 = vld [vmem:[#allocation8 + $0x4] sm:$0xf]
        %v647 = vld [vmem:[#allocation8 + $0x8] sm:$0xf]
        %v648 = vld [vmem:[#allocation8 + $0xc] sm:$0xf]
        %v649 = vld [vmem:[#allocation8 + $0x10] sm:$0xf]
        %v650 = vld [vmem:[#allocation8 + $0x14] sm:$0xf]
        %v651 = vld [vmem:[#allocation8 + $0x18] sm:$0xf]
        %v652 = vld [vmem:[#allocation8 + $0x1c] sm:$0xf]
        %v653 = vld [vmem:[#allocation8 + $0x20] sm:$0xf]
        %v654 = vld [vmem:[#allocation8 + $0x24] sm:$0xf]
        %v655 = vld [vmem:[#allocation8 + $0x28] sm:$0xf]
        %v656 = vld [vmem:[#allocation8 + $0x2c] sm:$0xf]
        %v657 = vld [vmem:[#allocation8 + $0x30] sm:$0xf]
        %v658 = vld [vmem:[#allocation8 + $0x34] sm:$0xf]
        %v659 = vld [vmem:[#allocation8 + $0x38] sm:$0xf]
        %v660 = vld [vmem:[#allocation8 + $0x3c] sm:$0xf]
        %v661 = vld [vmem:[#allocation8 + $0x40] sm:$0xf]
        %v662 = vld [vmem:[#allocation8 + $0x44] sm:$0xf]
        %v663 = vld [vmem:[#allocation8 + $0x48] sm:$0xf]
        %v664 = vld [vmem:[#allocation8 + $0x4c] sm:$0xf]
        %v665 = vld [vmem:[#allocation8 + $0x50] sm:$0xf]
        %v666 = vld [vmem:[#allocation8 + $0x54] sm:$0xf]
        %v667 = vld [vmem:[#allocation8 + $0x58] sm:$0xf]
        %v668 = vld [vmem:[#allocation8 + $0x5c] sm:$0xf]
        %v669 = vld [vmem:[#allocation8 + $0x60] sm:$0xf]
        %v670 = vld [vmem:[#allocation8 + $0x64] sm:$0xf]
        %v671 = vld [vmem:[#allocation8 + $0x68] sm:$0xf]
        %v672 = vld [vmem:[#allocation8 + $0x6c] sm:$0xf]
        %v673 = vld [vmem:[#allocation8 + $0x70] sm:$0xf]
        %v674 = vld [vmem:[#allocation8 + $0x74] sm:$0xf]
        %v675 = vld [vmem:[#allocation8 + $0x78] sm:$0xf]
        %v676 = vld [vmem:[#allocation8 + $0x7c] sm:$0xf]
        %v709 = vunpack.c.l.b16 %v645
        %v710 = vunpack.c.l.b16 %v646
        %v711 = vunpack.c.l.b16 %v647
        %v712 = vunpack.c.l.b16 %v648
        %v713 = vunpack.c.l.b16 %v649
        %v714 = vunpack.c.l.b16 %v650
        %v715 = vunpack.c.l.b16 %v651
        %v716 = vunpack.c.l.b16 %v652
        %v717 = vunpack.c.l.b16 %v653
        %v718 = vunpack.c.l.b16 %v654
        %v719 = vunpack.c.l.b16 %v655
        %v720 = vunpack.c.l.b16 %v656
        %v721 = vunpack.c.l.b16 %v657
        %v722 = vunpack.c.l.b16 %v658
        %v723 = vunpack.c.l.b16 %v659
        %v724 = vunpack.c.l.b16 %v660
        %v725 = vunpack.c.l.b16 %v661
        %v726 = vunpack.c.l.b16 %v662
        %v727 = vunpack.c.l.b16 %v663
        %v728 = vunpack.c.l.b16 %v664
        %v729 = vunpack.c.l.b16 %v665
        %v730 = vunpack.c.l.b16 %v666
        %v731 = vunpack.c.l.b16 %v667
        %v732 = vunpack.c.l.b16 %v668
        %v733 = vunpack.c.l.b16 %v669
        %v734 = vunpack.c.l.b16 %v670
        %v735 = vunpack.c.l.b16 %v671
        %v736 = vunpack.c.l.b16 %v672
        %v737 = vunpack.c.l.b16 %v673
        %v738 = vunpack.c.l.b16 %v674
        %v739 = vunpack.c.l.b16 %v675
        %v740 = vunpack.c.l.b16 %v676
        %v741 = vpack.c.b16 %v710, %v709
        %v742 = vpack.c.b16 %v712, %v711
        %v743 = vpack.c.b16 %v714, %v713
        %v744 = vpack.c.b16 %v716, %v715
        %v745 = vpack.c.b16 %v718, %v717
        %v746 = vpack.c.b16 %v720, %v719
        %v747 = vpack.c.b16 %v722, %v721
        %v748 = vpack.c.b16 %v724, %v723
        %v749 = vpack.c.b16 %v726, %v725
        %v750 = vpack.c.b16 %v728, %v727
        %v751 = vpack.c.b16 %v730, %v729
        %v752 = vpack.c.b16 %v732, %v731
        %v753 = vpack.c.b16 %v734, %v733
        %v754 = vpack.c.b16 %v736, %v735
        %v755 = vpack.c.b16 %v738, %v737
        %v756 = vpack.c.b16 %v740, %v739
        %773 = vmatprep.subr.bf16.mxu0 0
        %774 = vmatpush1.bf16.msra.mxu0 %v748
        %775 = vmatprep.subr.bf16.mxu0 0
        %776 = vmatpush1.bf16.msra.mxu0 %v747
        %777 = vmatprep.subr.bf16.mxu0 0
        %778 = vmatpush1.bf16.msra.mxu0 %v746
        %779 = vmatprep.subr.bf16.mxu0 0
        %780 = vmatpush1.bf16.msra.mxu0 %v745
        %781 = vmatprep.subr.bf16.mxu0 0
        %782 = vmatpush1.bf16.msra.mxu0 %v744
        %783 = vmatprep.subr.bf16.mxu0 0
        %784 = vmatpush1.bf16.msra.mxu0 %v743
        %785 = vmatprep.subr.bf16.mxu0 0
        %786 = vmatpush1.bf16.msra.mxu0 %v742
        %787 = vmatprep.subr.bf16.mxu0 0
        %788 = vmatpush1.bf16.msra.mxu0 %v741
        %789 = vmatprep.subr.bf16.mxu0 0
        %790 = vmatpush2.bf16.msra.mxu0 %v756
        %791 = vmatprep.subr.bf16.mxu0 0
        %792 = vmatpush2.bf16.msra.mxu0 %v755
        %793 = vmatprep.subr.bf16.mxu0 0
        %794 = vmatpush2.bf16.msra.mxu0 %v754
        %795 = vmatprep.subr.bf16.mxu0 0
        %796 = vmatpush2.bf16.msra.mxu0 %v753
        %797 = vmatprep.subr.bf16.mxu0 0
        %798 = vmatpush2.bf16.msra.mxu0 %v752
        %799 = vmatprep.subr.bf16.mxu0 0
        %800 = vmatpush2.bf16.msra.mxu0 %v751
        %801 = vmatprep.subr.bf16.mxu0 0
        %802 = vmatpush2.bf16.msra.mxu0 %v750
        %803 = vmatprep.subr.bf16.mxu0 0
        %804 = vmatpush2.bf16.msra.mxu0 %v749
        %805 = vmatprep.mubr.bf16.mxu0 %v382
        %806 = vmatmul.mubr.bf16.gmra.mxu0 %v644
        %v807 = vpop.f32.mrf.mxu0
        %v808 = vadd.f32 0.0, %v807
        %v809 = vpop.f32.mrf.mxu0
        %v810 = vpop.f32.mrf.mxu0
        %v811 = vpop.f32.mrf.mxu0
        %812 = vdwg.mxu0
        %v813 = vxor.u32 %v808, 2147483648
        %v814 = vmul.f32 %v813, 1.442695
        %v815 = vpow.pop %v814
        %v816 = vadd.f32 %v815, 1.0
        %v817 = vrcp.pop %v816
        %v818 = vmul.f32 1.0, %v817
        %v819 = vmul.f32 %v818, %v364
        %820 = vst [vmem:[%s352] sm:$0xff] %v819
        %821 = vst [vmem:[%s359] sm:$0xff] %v601
        %s822 = sand.u32 %s173, 1
        %s823 = scalar_lea.sflag [#allocation4], %s822
        %s824 = sand.u32 %s173, 1
        %s825 = smul.addr %s824, 8
        %s826 = scalar_lea.vmem [#allocation10], %s825
        %s827 = sand.u32 %s201, 1
        %s828 = scalar_lea.sflag [#allocation12], %s827
        %s829 = sand.u32 %s201, 1
        %s830 = smul.addr %s829, 8
        %s831 = scalar_lea.vmem [#allocation11], %s830
        // Predicated region
        $region57: #{tpu_custom_call.1} parent=39 // pred_check
          %p832 = pneg %p183
        $region58: #{tpu_custom_call.1} parent=39 // pred_check_branch
          %834 = sbr.rel (%p832) target = $region60
        $region59: #{tpu_custom_call.1} parent=39 // pred_region
          %s836 = ssub.s32 128, 128
          %837 = vsyncadd %s823, %s836
          %s838 = smul.addr %s34, 2
          %s839 = sadd.s32 %s33, %s838
          %s840 = smul.addr %s839, 128
          %s841 = scalar_lea.hbm %s5, %s840
          %s843 = sshll.u32 %s826, 4
          %s844 = int_to_ptr.vmem [resolvable:$true] %s843
          %846 = dma.vmem_to_hbm [thread:$0]  %s844, 128, %s841, %s823
        $region60: #{tpu_custom_call.1} parent=39 // pred_fallthru
          _
        // Predicated region
        $region61: #{tpu_custom_call.1} parent=39 // pred_check
          %p847 = pneg %p211
        $region62: #{tpu_custom_call.1} parent=39 // pred_check_branch
          %849 = sbr.rel (%p847) target = $region64
        $region63: #{tpu_custom_call.1} parent=39 // pred_region
          %s851 = ssub.s32 128, 128
          %852 = vsyncadd %s828, %s851
          %s853 = smul.addr %s34, 2
          %s854 = sadd.s32 %s33, %s853
          %s855 = smul.addr %s854, 128
          %s856 = scalar_lea.hbm %s6, %s855
          %s858 = sshll.u32 %s831, 4
          %s859 = int_to_ptr.vmem [resolvable:$true] %s858
          %861 = dma.vmem_to_hbm [thread:$0]  %s859, 128, %s856, %s828
        $region64: #{tpu_custom_call.1} parent=39 // pred_fallthru
          _
      $region40: #{tpu_custom_call.1} parent=5 // pred_fallthru
        _
      %p862 = scmp.le.s32.totalorder 2, %s24
      // Predicated region
      $region65: #{tpu_custom_call.1} parent=5 // pred_check
        %p863 = pneg %p862
      $region66: #{tpu_custom_call.1} parent=5 // pred_check_branch
        %865 = sbr.rel (%p863) target = $region68
      $region67: #{tpu_custom_call.1} parent=5 // pred_region
        %s866 = ssub.s32 %s24, 2
        // Predicated region
        $region69: #{tpu_custom_call.1} parent=67 // pred_check
          %p867 = pneg %p189
        $region70: #{tpu_custom_call.1} parent=67 // pred_check_branch
          %869 = sbr.rel (%p867) target = $region72
        $region71: #{tpu_custom_call.1} parent=67 // pred_region
          %s870 = sand.u32 %s174, 1
          %s871 = scalar_lea.sflag [#allocation4], %s870
          %s872 = sand.u32 %s174, 1
          %s873 = smul.addr %s872, 8
          %s874 = scalar_lea.vmem [#allocation10], %s873
          %875 = dma.done %s871, 128
        $region72: #{tpu_custom_call.1} parent=67 // pred_fallthru
          _
        // Predicated region
        $region73: #{tpu_custom_call.1} parent=67 // pred_check
          %p876 = pneg %p217
        $region74: #{tpu_custom_call.1} parent=67 // pred_check_branch
          %878 = sbr.rel (%p876) target = $region76
        $region75: #{tpu_custom_call.1} parent=67 // pred_region
          %s879 = sand.u32 %s202, 1
          %s880 = scalar_lea.sflag [#allocation12], %s879
          %s881 = sand.u32 %s202, 1
          %s882 = smul.addr %s881, 8
          %s883 = scalar_lea.vmem [#allocation11], %s882
          %884 = dma.done %s880, 128
        $region76: #{tpu_custom_call.1} parent=67 // pred_fallthru
          _
      $region68: #{tpu_custom_call.1} parent=5 // pred_fallthru
        _
    $region6: #{tpu_custom_call.1} parent=1 // loop_footer
      %s28 = sadd.s32 1, %s24
    $region7: #{tpu_custom_call.1} parent=1 // loop_footer_branch
      %23 = sbr.rel target = $region3
    $region8: #{tpu_custom_call.1} parent=1 // loop_exit
      _
    %885 = vsyncpa [#allocation3], 1
    %s886 = scalar_lea.sflag [#allocation3], 1
    %887 = vsyncpa %s886, 1
    %888 = vsyncpa [#allocation6], 1
    %889 = vsyncpa [#allocation9], 1
    %890 = vsyncpa [#allocation4], 1
    %s891 = scalar_lea.sflag [#allocation4], 1
    %892 = vsyncpa %s891, 1
    %893 = vsyncpa [#allocation12], 1
    %s894 = scalar_lea.sflag [#allocation12], 1
    %895 = vsyncpa %s894, 1

// kernel: tpu_custom_call.1
$region0: #{tpu_custom_call.1}
  #allocation0 [shape = 'u32[]', space=smem, size = 0x4, offset = 0x4, fixed_abs, tag = 'smem constant byte address 0x4 - core index']
  #allocation1 [shape = 'u32[144,128]{1,0:T(1,128)}', space=vmem, size = 0x12000, scoped, tag = 'internal scratch']
  %s0 = inlined_call_operand.hbm [shape: f32[2,8,128], index: 0, kind: input, shape index: {}]
  %s1 = inlined_call_operand.hbm [shape: bf16[2,128,128], index: 1, kind: input, shape index: {}]
  %s2 = inlined_call_operand.vmem [shape: s32[2,1,128], index: 2, kind: input, shape index: {}]
  %s3 = inlined_call_operand.hbm [shape: bf16[128,128], index: 3, kind: input, shape index: {}]
  %s4 = inlined_call_operand.hbm [shape: bf16[256,128], index: 4, kind: input, shape index: {}]
  %s5 = inlined_call_operand.hbm [shape: f32[8,256], index: 5, kind: output, shape index: {0}]
  %s6 = inlined_call_operand.hbm [shape: f32[8,256], index: 6, kind: output, shape index: {1}]
  %7 = xla_tuple %s5, %s6
  %s8 = sld [smem:[#allocation0]]
  $region77: #{tpu_custom_call.1} parent=0
    _
  %s10 = ssub.s32 1, %s8
  %s11 = scalar_select 0, %s10, %s8
  $region1: #{tpu_custom_call.1} parent=0
    #allocation2 [shape = 'u8[8192]{0}', space=vmem, size = 0x2000, scoped, tag = 'input window, operand 0']
    #allocation3 [shape = 's32[2]{0}', space=sflag, size = 0x8, scoped, tag = 'scoped memory for tpu_custom_call.1']
    #allocation4 [shape = 's32[2]{0}', space=sflag, size = 0x8, scoped, tag = 'scoped memory for tpu_custom_call.1']
    #allocation5 [shape = 'u8[65536]{0}', space=vmem, size = 0x10000, scoped, tag = 'input window, operand 1']
    #allocation6 [shape = 's32[2]{0}', space=sflag, size = 0x8, scoped, tag = 'scoped memory for tpu_custom_call.1']
    #allocation7 [shape = 'u8[32768]{0}', space=vmem, size = 0x8000, scoped, tag = 'input window, operand 3, single buffered']
    #allocation8 [shape = 'u8[65536]{0}', space=vmem, size = 0x10000, scoped, tag = 'input window, operand 4, single buffered']
    #allocation9 [shape = 's32[1]{0}', space=sflag, size = 0x4, scoped, tag = 'scoped memory for tpu_custom_call.1']
    #allocation10 [shape = 'u8[8192]{0}', space=vmem, size = 0x2000, scoped, tag = 'output window, operand 0']
    #allocation11 [shape = 'u8[8192]{0}', space=vmem, size = 0x2000, scoped, tag = 'output window, operand 1']
    #allocation12 [shape = 's32[2]{0}', space=sflag, size = 0x8, scoped, tag = 'scoped memory for tpu_custom_call.1']
    %12 = vsyncpa [#allocation3], 0
    %s13 = scalar_lea.sflag [#allocation3], 1
    %14 = vsyncpa %s13, 0
    %15 = vsyncpa [#allocation6], 0
    %s16 = scalar_lea.sflag [#allocation6], 1
    %17 = vsyncpa %s16, 0
    %18 = vsyncpa [#allocation9], 0
    %19 = vsyncpa [#allocation4], 0
    %s20 = scalar_lea.sflag [#allocation4], 1
    %21 = vsyncpa %s20, 0
    %22 = vsyncpa [#allocation12], 0
    %s23 = scalar_lea.sflag [#allocation12], 1
    %24 = vsyncpa %s23, 0
    loop: start=0, step=1, limit=4
    $region2: #{tpu_custom_call.1} parent=1 // loop_pre_header
      _
    $region3: #{tpu_custom_call.1} parent=1 // loop_header
      %s26 = sphi 0, %s30
      %p27 = scmp.ge.s32.totalorder %s26, 4
      %s33 = sphi 0, %s45
      %s34 = sphi 0, %s41
      %s35 = sphi 0, %s33
      %s36 = sphi 0, %s34
      %s37 = sphi 0, %s35
      %s38 = sphi 0, %s36
      %s50 = sphi 0, %s52
      %s53 = sphi 0, %s50
      %s54 = sphi 0, %s53
      %s70 = sphi 0, %s54
      %s76 = sphi 0, %s78
      %s79 = sphi 0, %s76
      %s80 = sphi 0, %s79
      %s96 = sphi 0, %s80
      %s102 = sphi 0, %s104
      %s105 = sphi 0, %s102
      %s106 = sphi 0, %s105
      %s122 = sphi 0, %s106
      %s126 = sphi 0, %s126
      %s128 = sphi 0, %s126
      %s129 = sphi 0, %s128
      %s143 = sphi 0, %s129
      %s147 = sphi 0, %s147
      %s149 = sphi 0, %s147
      %s150 = sphi 0, %s149
      %s164 = sphi 0, %s150
      %s172 = sphi 0, %s174
      %s175 = sphi 0, %s172
      %s176 = sphi 0, %s175
      %s192 = sphi 0, %s176
      %s200 = sphi 0, %s202
      %s203 = sphi 0, %s200
      %s204 = sphi 0, %s203
      %s220 = sphi 0, %s204
    $region4: #{tpu_custom_call.1} parent=1 // loop_header_branch
      %29 = sbr.rel (%p27) target = $region8
    $region5: #{tpu_custom_call.1} parent=1 // loop_body
      %s31 = ssub.s32 %s26, 1
      %s32 = ssub.s32 %s26, 2
      %s39 = sadd.s32 1, %s34
      %p40 = scmp.ge.s32.totalorder %s39, 1
      %s41 = scalar_select %p40, 0, %s39
      %s42 = sadd.s32 1, %s33
      %s43 = scalar_select %p40, %s42, %s33
      %p44 = scmp.ge.s32.totalorder %s43, 2
      %s45 = scalar_select %p44, 0, %s43
      %s46 = ssub.s32 %s33, %s45
      %s47 = ssub.s32 %s34, %s41
      %s48 = sor.u32 %s46, %s47
      %p49 = scmp.eq.s32.totalorder %s48, 0
      %s51 = sadd.s32 %s50, 1
      %s52 = scalar_select %p49, %s50, %s51
      %p55 = pneg %p49
      %p56 = scmp.eq.s32.totalorder %s26, 1
      %p57 = por %p55, %p56
      %p58 = scmp.ne.s32.totalorder %s50, %s53
      %p59 = scmp.eq.s32.totalorder %s26, 0
      %p60 = por %p58, %p59
      %p61 = scmp.ne.s32.totalorder %s50, %s53
      %p62 = scmp.eq.s32.totalorder %s31, 1
      %p63 = por %p61, %p62
      %p64 = scmp.ne.s32.totalorder %s53, %s54
      %p65 = scmp.eq.s32.totalorder %s31, 0
      %p66 = por %p64, %p65
      %p67 = scmp.ne.s32.totalorder %s53, %s54
      %p68 = scmp.eq.s32.totalorder %s32, 1
      %p69 = por %p67, %p68
      %p71 = scmp.ne.s32.totalorder %s54, %s70
      %p72 = scmp.eq.s32.totalorder %s32, 0
      %p73 = por %p71, %p72
      %s74 = ssub.s32 %s33, %s45
      %p75 = scmp.eq.s32.totalorder %s74, 0
      %s77 = sadd.s32 %s76, 1
      %s78 = scalar_select %p75, %s76, %s77
      %p81 = pneg %p75
      %p82 = scmp.eq.s32.totalorder %s26, 1
      %p83 = por %p81, %p82
      %p84 = scmp.ne.s32.totalorder %s76, %s79
      %p85 = scmp.eq.s32.totalorder %s26, 0
      %p86 = por %p84, %p85
      %p87 = scmp.ne.s32.totalorder %s76, %s79
      %p88 = scmp.eq.s32.totalorder %s31, 1
      %p89 = por %p87, %p88
      %p90 = scmp.ne.s32.totalorder %s79, %s80
      %p91 = scmp.eq.s32.totalorder %s31, 0
      %p92 = por %p90, %p91
      %p93 = scmp.ne.s32.totalorder %s79, %s80
      %p94 = scmp.eq.s32.totalorder %s32, 1
      %p95 = por %p93, %p94
      %p97 = scmp.ne.s32.totalorder %s80, %s96
      %p98 = scmp.eq.s32.totalorder %s32, 0
      %p99 = por %p97, %p98
      %s100 = ssub.s32 %s33, %s45
      %p101 = scmp.eq.s32.totalorder %s100, 0
      %s103 = sadd.s32 %s102, 1
      %s104 = scalar_select %p101, %s102, %s103
      %p107 = pneg %p101
      %p108 = scmp.eq.s32.totalorder %s26, 1
      %p109 = por %p107, %p108
      %p110 = scmp.ne.s32.totalorder %s102, %s105
      %p111 = scmp.eq.s32.totalorder %s26, 0
      %p112 = por %p110, %p111
      %p113 = scmp.ne.s32.totalorder %s102, %s105
      %p114 = scmp.eq.s32.totalorder %s31, 1
      %p115 = por %p113, %p114
      %p116 = scmp.ne.s32.totalorder %s105, %s106
      %p117 = scmp.eq.s32.totalorder %s31, 0
      %p118 = por %p116, %p117
      %p119 = scmp.ne.s32.totalorder %s105, %s106
      %p120 = scmp.eq.s32.totalorder %s32, 1
      %p121 = por %p119, %p120
      %p123 = scmp.ne.s32.totalorder %s106, %s122
      %p124 = scmp.eq.s32.totalorder %s32, 0
      %p125 = por %p123, %p124
      %s127 = sadd.s32 %s126, 1
      %p130 = scmp.eq.s32.totalorder %s26, 1
      %p131 = scmp.ne.s32.totalorder %s126, %s128
      %p132 = scmp.eq.s32.totalorder %s26, 0
      %p133 = por %p131, %p132
      %p134 = scmp.ne.s32.totalorder %s126, %s128
      %p135 = scmp.eq.s32.totalorder %s31, 1
      %p136 = por %p134, %p135
      %p137 = scmp.ne.s32.totalorder %s128, %s129
      %p138 = scmp.eq.s32.totalorder %s31, 0
      %p139 = por %p137, %p138
      %p140 = scmp.ne.s32.totalorder %s128, %s129
      %p141 = scmp.eq.s32.totalorder %s32, 1
      %p142 = por %p140, %p141
      %p144 = scmp.ne.s32.totalorder %s129, %s143
      %p145 = scmp.eq.s32.totalorder %s32, 0
      %p146 = por %p144, %p145
      %s148 = sadd.s32 %s147, 1
      %p151 = scmp.eq.s32.totalorder %s26, 1
      %p152 = scmp.ne.s32.totalorder %s147, %s149
      %p153 = scmp.eq.s32.totalorder %s26, 0
      %p154 = por %p152, %p153
      %p155 = scmp.ne.s32.totalorder %s147, %s149
      %p156 = scmp.eq.s32.totalorder %s31, 1
      %p157 = por %p155, %p156
      %p158 = scmp.ne.s32.totalorder %s149, %s150
      %p159 = scmp.eq.s32.totalorder %s31, 0
      %p160 = por %p158, %p159
      %p161 = scmp.ne.s32.totalorder %s149, %s150
      %p162 = scmp.eq.s32.totalorder %s32, 1
      %p163 = por %p161, %p162
      %p165 = scmp.ne.s32.totalorder %s150, %s164
      %p166 = scmp.eq.s32.totalorder %s32, 0
      %p167 = por %p165, %p166
      %s168 = ssub.s32 %s34, %s41
      %s169 = ssub.s32 %s33, %s45
      %s170 = sor.u32 %s168, %s169
      %p171 = scmp.eq.s32.totalorder %s170, 0
      %s173 = sadd.s32 %s172, 1
      %s174 = scalar_select %p171, %s172, %s173
      %p177 = pneg %p171
      %p178 = scmp.eq.s32.totalorder %s26, 1
      %p179 = por %p177, %p178
      %p180 = scmp.ne.s32.totalorder %s172, %s175
      %p181 = scmp.eq.s32.totalorder %s26, 0
      %p182 = por %p180, %p181
      %p183 = scmp.ne.s32.totalorder %s172, %s175
      %p184 = scmp.eq.s32.totalorder %s31, 1
      %p185 = por %p183, %p184
      %p186 = scmp.ne.s32.totalorder %s175, %s176
      %p187 = scmp.eq.s32.totalorder %s31, 0
      %p188 = por %p186, %p187
      %p189 = scmp.ne.s32.totalorder %s175, %s176
      %p190 = scmp.eq.s32.totalorder %s32, 1
      %p191 = por %p189, %p190
      %p193 = scmp.ne.s32.totalorder %s176, %s192
      %p194 = scmp.eq.s32.totalorder %s32, 0
      %p195 = por %p193, %p194
      %s196 = ssub.s32 %s34, %s41
      %s197 = ssub.s32 %s33, %s45
      %s198 = sor.u32 %s196, %s197
      %p199 = scmp.eq.s32.totalorder %s198, 0
      %s201 = sadd.s32 %s200, 1
      %s202 = scalar_select %p199, %s200, %s201
      %p205 = pneg %p199
      %p206 = scmp.eq.s32.totalorder %s26, 1
      %p207 = por %p205, %p206
      %p208 = scmp.ne.s32.totalorder %s200, %s203
      %p209 = scmp.eq.s32.totalorder %s26, 0
      %p210 = por %p208, %p209
      %p211 = scmp.ne.s32.totalorder %s200, %s203
      %p212 = scmp.eq.s32.totalorder %s31, 1
      %p213 = por %p211, %p212
      %p214 = scmp.ne.s32.totalorder %s203, %s204
      %p215 = scmp.eq.s32.totalorder %s31, 0
      %p216 = por %p214, %p215
      %p217 = scmp.ne.s32.totalorder %s203, %s204
      %p218 = scmp.eq.s32.totalorder %s32, 1
      %p219 = por %p217, %p218
      %p221 = scmp.ne.s32.totalorder %s204, %s220
      %p222 = scmp.eq.s32.totalorder %s32, 0
      %p223 = por %p221, %p222
      %p224 = scmp.le.s32.totalorder 1, %s26
      %p225 = scmp.lt.s32.totalorder %s26, 3
      %p226 = pnand %p224, %p225
      %p227 = pneg %p226
      // Predicated region
      $region9: #{tpu_custom_call.1} parent=5 // pred_check
        _
      $region10: #{tpu_custom_call.1} parent=5 // pred_check_branch
        %229 = sbr.rel (%p226) target = $region12
      $region11: #{tpu_custom_call.1} parent=5 // pred_region
        %s230 = ssub.s32 %s26, 1
        // Predicated region
        $region13: #{tpu_custom_call.1} parent=11 // pred_check
          %p231 = pneg %p139
        $region14: #{tpu_custom_call.1} parent=11 // pred_check_branch
          %233 = sbr.rel (%p231) target = $region16
        $region15: #{tpu_custom_call.1} parent=11 // pred_region
          %s235 = ssub.s32 1024, 1024
          %236 = vsyncadd [#allocation6], %s235
          %s237 = sshll.u32 [#allocation7], 4
          %s238 = int_to_ptr.vmem [resolvable:$true] %s237
          %243 = dma.hbm_to_vmem [thread:$0]  %s3, 1024, %s238, [#allocation6], 64, 64, 4
        $region16: #{tpu_custom_call.1} parent=11 // pred_fallthru
          _
        // Predicated region
        $region17: #{tpu_custom_call.1} parent=11 // pred_check
          %p244 = pneg %p160
        $region18: #{tpu_custom_call.1} parent=11 // pred_check_branch
          %246 = sbr.rel (%p244) target = $region20
        $region19: #{tpu_custom_call.1} parent=11 // pred_region
          %s248 = ssub.s32 2048, 2048
          %249 = vsyncadd [#allocation9], %s248
          %s250 = sshll.u32 [#allocation8], 4
          %s251 = int_to_ptr.vmem [resolvable:$true] %s250
          %256 = dma.hbm_to_vmem [thread:$0]  %s4, 2048, %s251, [#allocation9], 64, 64, 4
        $region20: #{tpu_custom_call.1} parent=11 // pred_fallthru
          _
      $region12: #{tpu_custom_call.1} parent=5 // pred_fallthru
        _
      %p257 = scmp.lt.s32.totalorder %s26, 2
      // Predicated region
      $region21: #{tpu_custom_call.1} parent=5 // pred_check
        %p258 = pneg %p257
      $region22: #{tpu_custom_call.1} parent=5 // pred_check_branch
        %260 = sbr.rel (%p258) target = $region24
      $region23: #{tpu_custom_call.1} parent=5 // pred_region
        // Predicated region
        $region25: #{tpu_custom_call.1} parent=23 // pred_check
          %p261 = pneg %p60
        $region26: #{tpu_custom_call.1} parent=23 // pred_check_branch
          %263 = sbr.rel (%p261) target = $region28
        $region27: #{tpu_custom_call.1} parent=23 // pred_region
          %s264 = sand.u32 %s50, 1
          %s265 = scalar_lea.sflag [#allocation3], %s264
          %s266 = sand.u32 %s50, 1
          %s267 = smul.addr %s266, 8
          %s268 = scalar_lea.vmem [#allocation2], %s267
          %s270 = ssub.s32 128, 128
          %271 = vsyncadd %s265, %s270
          %s272 = sadd.s32 %s34, %s33
          %s273 = smul.addr %s272, 128
          %s274 = scalar_lea.hbm %s0, %s273
          %s276 = sshll.u32 %s268, 4
          %s277 = int_to_ptr.vmem [resolvable:$true] %s276
          %279 = dma.hbm_to_vmem [thread:$0]  %s274, 128, %s277, %s265
        $region28: #{tpu_custom_call.1} parent=23 // pred_fallthru
          _
        // Predicated region
        $region29: #{tpu_custom_call.1} parent=23 // pred_check
          %p280 = pneg %p86
        $region30: #{tpu_custom_call.1} parent=23 // pred_check_branch
          %282 = sbr.rel (%p280) target = $region32
        $region31: #{tpu_custom_call.1} parent=23 // pred_region
          %s283 = sand.u32 %s26, 1
          %s284 = scalar_lea.sflag [#allocation6], %s283
          %s285 = sand.u32 %s76, 1
          %s286 = smul.addr %s285, 64
          %s287 = scalar_lea.vmem [#allocation5], %s286
          %s289 = ssub.s32 1024, 1024
          %290 = vsyncadd %s284, %s289
          %s291 = smul.addr %s33, 16
          %s292 = smul.addr %s291, 64
          %s293 = scalar_lea.hbm %s1, %s292
          %s294 = sshll.u32 %s287, 4
          %s295 = int_to_ptr.vmem [resolvable:$true] %s294
          %300 = dma.hbm_to_vmem [thread:$0]  %s293, 1024, %s295, %s284, 64, 64, 4
        $region32: #{tpu_custom_call.1} parent=23 // pred_fallthru
          _
        // Predicated region
        $region33: #{tpu_custom_call.1} parent=23 // pred_check
          %p301 = pneg %p112
        $region34: #{tpu_custom_call.1} parent=23 // pred_check_branch
          %303 = sbr.rel (%p301) target = $region36
        $region35: #{tpu_custom_call.1} parent=23 // pred_region
          %p304 = scmp.lt.s32.totalorder %s33, 1
          %s305 = scalar_select %p304, %s33, 1
          %s306 = scalar_lea.vmem %s2, %s305
        $region36: #{tpu_custom_call.1} parent=23 // pred_fallthru
          _
      $region24: #{tpu_custom_call.1} parent=5 // pred_fallthru
        _
      %p307 = scmp.le.s32.totalorder 1, %s26
      %p308 = scmp.lt.s32.totalorder %s26, 3
      %p309 = pnand %p307, %p308
      %p310 = pneg %p309
      // Predicated region
      $region37: #{tpu_custom_call.1} parent=5 // pred_check
        _
      $region38: #{tpu_custom_call.1} parent=5 // pred_check_branch
        %312 = sbr.rel (%p309) target = $region40
      $region39: #{tpu_custom_call.1} parent=5 // pred_region
        %s313 = ssub.s32 %s26, 1
        %s314 = sand.u32 %s53, 1
        %s315 = scalar_lea.sflag [#allocation3], %s314
        %s316 = sand.u32 %s53, 1
        %s317 = smul.addr %s316, 8
        %s318 = scalar_lea.vmem [#allocation2], %s317
        // Predicated region
        $region41: #{tpu_custom_call.1} parent=39 // pred_check
          %p319 = pneg %p66
        $region42: #{tpu_custom_call.1} parent=39 // pred_check_branch
          %321 = sbr.rel (%p319) target = $region44
        $region43: #{tpu_custom_call.1} parent=39 // pred_region
          %322 = dma.done %s315, 128
        $region44: #{tpu_custom_call.1} parent=39 // pred_fallthru
          _
        %s323 = sand.u32 %s31, 1
        %s324 = scalar_lea.sflag [#allocation6], %s323
        %s325 = sand.u32 %s79, 1
        %s326 = smul.addr %s325, 64
        %s327 = scalar_lea.vmem [#allocation5], %s326
        // Predicated region
        $region45: #{tpu_custom_call.1} parent=39 // pred_check
          %p328 = pneg %p92
        $region46: #{tpu_custom_call.1} parent=39 // pred_check_branch
          %330 = sbr.rel (%p328) target = $region48
        $region47: #{tpu_custom_call.1} parent=39 // pred_region
          %331 = dma.done %s324, 1024
        $region48: #{tpu_custom_call.1} parent=39 // pred_fallthru
          _
        // Predicated region
        $region49: #{tpu_custom_call.1} parent=39 // pred_check
          %p332 = pneg %p139
        $region50: #{tpu_custom_call.1} parent=39 // pred_check_branch
          %334 = sbr.rel (%p332) target = $region52
        $region51: #{tpu_custom_call.1} parent=39 // pred_region
          %335 = dma.done [#allocation6], 1024
        $region52: #{tpu_custom_call.1} parent=39 // pred_fallthru
          _
        // Predicated region
        $region53: #{tpu_custom_call.1} parent=39 // pred_check
          %p336 = pneg %p160
        $region54: #{tpu_custom_call.1} parent=39 // pred_check_branch
          %338 = sbr.rel (%p336) target = $region56
        $region55: #{tpu_custom_call.1} parent=39 // pred_region
          %339 = dma.done [#allocation9], 2048
        $region56: #{tpu_custom_call.1} parent=39 // pred_fallthru
          _
        %s340 = sand.u32 %s53, 1
        %s341 = scalar_lea.sflag [#allocation3], %s340
        %s342 = sand.u32 %s53, 1
        %s343 = smul.addr %s342, 8
        %s344 = scalar_lea.vmem [#allocation2], %s343
        %p345 = pneg %p66
        %p346 = pneg %p63
        %s347 = sand.u32 %s31, 1
        %s348 = scalar_lea.sflag [#allocation6], %s347
        %s349 = sand.u32 %s79, 1
        %s350 = smul.addr %s349, 64
        %s351 = scalar_lea.vmem [#allocation5], %s350
        %p352 = pneg %p92
        %p353 = pneg %p89
        %p354 = scmp.lt.s32.totalorder %s35, 1
        %s355 = scalar_select %p354, %s35, 1
        %s356 = scalar_lea.vmem %s2, %s355
        %p357 = pneg %p118
        %p358 = pneg %p115
        %p359 = pneg %p139
        %p360 = pneg %p136
        %p361 = pneg %p160
        %p362 = pneg %p157
        %p363 = pneg %p188
        %p364 = pneg %p185
        %s365 = sand.u32 %s175, 1
        %s366 = scalar_lea.sflag [#allocation4], %s365
        %s367 = sand.u32 %s175, 1
        %s368 = smul.addr %s367, 8
        %s369 = scalar_lea.vmem [#allocation10], %s368
        %p370 = pneg %p216
        %p371 = pneg %p213
        %s372 = sand.u32 %s203, 1
        %s373 = scalar_lea.sflag [#allocation12], %s372
        %s374 = sand.u32 %s203, 1
        %s375 = smul.addr %s374, 8
        %s376 = scalar_lea.vmem [#allocation11], %s375
        %p377 = scmp.lt.s32.totalorder %s35, 1
        %s378 = scalar_select %p377, %s35, 1
        %s379 = scalar_lea.vmem %s2, %s378
        %v381 = vld [vmem:[%s318] sm:$0xff]
        %v382 = vld [vmem:[%s327] sm:$0xf]
        %v383 = vld [vmem:[%s327 + $0x4] sm:$0xf]
        %v384 = vld [vmem:[%s327 + $0x8] sm:$0xf]
        %v385 = vld [vmem:[%s327 + $0xc] sm:$0xf]
        %v386 = vld [vmem:[%s327 + $0x10] sm:$0xf]
        %v387 = vld [vmem:[%s327 + $0x14] sm:$0xf]
        %v388 = vld [vmem:[%s327 + $0x18] sm:$0xf]
        %v389 = vld [vmem:[%s327 + $0x1c] sm:$0xf]
        %v390 = vld [vmem:[%s327 + $0x20] sm:$0xf]
        %v391 = vld [vmem:[%s327 + $0x24] sm:$0xf]
        %v392 = vld [vmem:[%s327 + $0x28] sm:$0xf]
        %v393 = vld [vmem:[%s327 + $0x2c] sm:$0xf]
        %v394 = vld [vmem:[%s327 + $0x30] sm:$0xf]
        %v395 = vld [vmem:[%s327 + $0x34] sm:$0xf]
        %v396 = vld [vmem:[%s327 + $0x38] sm:$0xf]
        %v397 = vld [vmem:[%s327 + $0x3c] sm:$0xf]
        %v398 = vld [vmem:[%s379] sm:$0x1]
        %v399 = vpack.c.bf16 %v381, %v381
        %v400 = vld [vmem:[#allocation7] sm:$0xf]
        %v401 = vld [vmem:[#allocation7 + $0x4] sm:$0xf]
        %v402 = vld [vmem:[#allocation7 + $0x8] sm:$0xf]
        %v403 = vld [vmem:[#allocation7 + $0xc] sm:$0xf]
        %v404 = vld [vmem:[#allocation7 + $0x10] sm:$0xf]
        %v405 = vld [vmem:[#allocation7 + $0x14] sm:$0xf]
        %v406 = vld [vmem:[#allocation7 + $0x18] sm:$0xf]
        %v407 = vld [vmem:[#allocation7 + $0x1c] sm:$0xf]
        %v408 = vld [vmem:[#allocation7 + $0x20] sm:$0xf]
        %v409 = vld [vmem:[#allocation7 + $0x24] sm:$0xf]
        %v410 = vld [vmem:[#allocation7 + $0x28] sm:$0xf]
        %v411 = vld [vmem:[#allocation7 + $0x2c] sm:$0xf]
        %v412 = vld [vmem:[#allocation7 + $0x30] sm:$0xf]
        %v413 = vld [vmem:[#allocation7 + $0x34] sm:$0xf]
        %v414 = vld [vmem:[#allocation7 + $0x38] sm:$0xf]
        %v415 = vld [vmem:[#allocation7 + $0x3c] sm:$0xf]
        %v432 = vunpack.c.l.b16 %v400
        %v433 = vunpack.c.l.b16 %v401
        %v434 = vunpack.c.l.b16 %v402
        %v435 = vunpack.c.l.b16 %v403
        %v436 = vunpack.c.l.b16 %v404
        %v437 = vunpack.c.l.b16 %v405
        %v438 = vunpack.c.l.b16 %v406
        %v439 = vunpack.c.l.b16 %v407
        %v440 = vunpack.c.l.b16 %v408
        %v441 = vunpack.c.l.b16 %v409
        %v442 = vunpack.c.l.b16 %v410
        %v443 = vunpack.c.l.b16 %v411
        %v444 = vunpack.c.l.b16 %v412
        %v445 = vunpack.c.l.b16 %v413
        %v446 = vunpack.c.l.b16 %v414
        %v447 = vunpack.c.l.b16 %v415
        %v448 = vpack.c.b16 %v433, %v432
        %v449 = vpack.c.b16 %v435, %v434
        %v450 = vpack.c.b16 %v437, %v436
        %v451 = vpack.c.b16 %v439, %v438
        %v452 = vpack.c.b16 %v441, %v440
        %v453 = vpack.c.b16 %v443, %v442
        %v454 = vpack.c.b16 %v445, %v444
        %v455 = vpack.c.b16 %v447, %v446
        %464 = vmatprep.subr.bf16.mxu0 0
        %465 = vmatpush1.bf16.msra.mxu0 %v455
        %466 = vmatprep.subr.bf16.mxu0 0
        %467 = vmatpush1.bf16.msra.mxu0 %v454
        %468 = vmatprep.subr.bf16.mxu0 0
        %469 = vmatpush1.bf16.msra.mxu0 %v453
        %470 = vmatprep.subr.bf16.mxu0 0
        %471 = vmatpush1.bf16.msra.mxu0 %v452
        %472 = vmatprep.subr.bf16.mxu0 0
        %473 = vmatpush1.bf16.msra.mxu0 %v451
        %474 = vmatprep.subr.bf16.mxu0 0
        %475 = vmatpush1.bf16.msra.mxu0 %v450
        %476 = vmatprep.subr.bf16.mxu0 0
        %477 = vmatpush1.bf16.msra.mxu0 %v449
        %478 = vmatprep.subr.bf16.mxu0 0
        %479 = vmatpush1.bf16.msra.mxu0 %v448
        %480 = vmatprep.subr.bf16.mxu0 0
        %481 = vmatpush2.bf16.msra.mxu0 0
        %482 = vmatprep.subr.bf16.mxu0 0
        %483 = vmatpush2.bf16.msra.mxu0 0
        %484 = vmatprep.subr.bf16.mxu0 0
        %485 = vmatpush2.bf16.msra.mxu0 0
        %486 = vmatprep.subr.bf16.mxu0 0
        %487 = vmatpush2.bf16.msra.mxu0 0
        %488 = vmatprep.subr.bf16.mxu0 0
        %489 = vmatpush2.bf16.msra.mxu0 0
        %490 = vmatprep.subr.bf16.mxu0 0
        %491 = vmatpush2.bf16.msra.mxu0 0
        %492 = vmatprep.subr.bf16.mxu0 0
        %493 = vmatpush2.bf16.msra.mxu0 0
        %494 = vmatprep.subr.bf16.mxu0 0
        %495 = vmatpush2.bf16.msra.mxu0 0
        %496 = vmatprep.mubr.bf16.mxu0 0
        %497 = vmatmul.mubr.bf16.gmra.mxu0 %v399
        %v498 = vpop.f32.mrf.mxu0
        %v499 = vadd.f32 0.0, %v498
        %v500 = vpop.f32.mrf.mxu0
        %v501 = vpop.f32.mrf.mxu0
        %v502 = vpop.f32.mrf.mxu0
        %503 = vdwg.mxu0
        %v504 = vpack.c.bf16 %v499, %v499
        %v521 = vunpack.c.l.b16 %v382
        %v522 = vunpack.c.l.b16 %v383
        %v523 = vunpack.c.l.b16 %v384
        %v524 = vunpack.c.l.b16 %v385
        %v525 = vunpack.c.l.b16 %v386
        %v526 = vunpack.c.l.b16 %v387
        %v527 = vunpack.c.l.b16 %v388
        %v528 = vunpack.c.l.b16 %v389
        %v529 = vunpack.c.l.b16 %v390
        %v530 = vunpack.c.l.b16 %v391
        %v531 = vunpack.c.l.b16 %v392
        %v532 = vunpack.c.l.b16 %v393
        %v533 = vunpack.c.l.b16 %v394
        %v534 = vunpack.c.l.b16 %v395
        %v535 = vunpack.c.l.b16 %v396
        %v536 = vunpack.c.l.b16 %v397
        %v537 = vpack.c.b16 %v522, %v521
        %v538 = vpack.c.b16 %v524, %v523
        %v539 = vpack.c.b16 %v526, %v525
        %v540 = vpack.c.b16 %v528, %v527
        %v541 = vpack.c.b16 %v530, %v529
        %v542 = vpack.c.b16 %v532, %v531
        %v543 = vpack.c.b16 %v534, %v533
        %v544 = vpack.c.b16 %v536, %v535
        %553 = vmatprep.subr.bf16.mxu0 0
        %554 = vmatpush1.bf16.xpose.msra.mxu0 %v544
        %555 = vmatprep.subr.bf16.mxu0 0
        %556 = vmatpush1.bf16.xpose.msra.mxu0 %v543
        %557 = vmatprep.subr.bf16.mxu0 0
        %558 = vmatpush1.bf16.xpose.msra.mxu0 %v542
        %559 = vmatprep.subr.bf16.mxu0 0
        %560 = vmatpush1.bf16.xpose.msra.mxu0 %v541
        %561 = vmatprep.subr.bf16.mxu0 0
        %562 = vmatpush1.bf16.xpose.msra.mxu0 %v540
        %563 = vmatprep.subr.bf16.mxu0 0
        %564 = vmatpush1.bf16.xpose.msra.mxu0 %v539
        %565 = vmatprep.subr.bf16.mxu0 0
        %566 = vmatpush1.bf16.xpose.msra.mxu0 %v538
        %567 = vmatprep.subr.bf16.mxu0 0
        %568 = vmatpush1.bf16.xpose.msra.mxu0 %v537
        %569 = vmatprep.subr.bf16.mxu0 0
        %570 = vmatpush2.bf16.xpose.msra.mxu0 0
        %571 = vmatprep.subr.bf16.mxu0 0
        %572 = vmatpush2.bf16.xpose.msra.mxu0 0
        %573 = vmatprep.subr.bf16.mxu0 0
        %574 = vmatpush2.bf16.xpose.msra.mxu0 0
        %575 = vmatprep.subr.bf16.mxu0 0
        %576 = vmatpush2.bf16.xpose.msra.mxu0 0
        %577 = vmatprep.subr.bf16.mxu0 0
        %578 = vmatpush2.bf16.xpose.msra.mxu0 0
        %579 = vmatprep.subr.bf16.mxu0 0
        %580 = vmatpush2.bf16.xpose.msra.mxu0 0
        %581 = vmatprep.subr.bf16.mxu0 0
        %582 = vmatpush2.bf16.xpose.msra.mxu0 0
        %583 = vmatprep.subr.bf16.mxu0 0
        %584 = vmatpush2.bf16.xpose.msra.mxu0 0
        %585 = vmatprep.mubr.bf16.mxu0 0
        %586 = vmatmul.mubr.bf16.gmra.mxu0 %v504
        %v587 = vpop.f32.mrf.mxu0
        %v588 = vadd.f32 0.0, %v587
        %v589 = vpop.f32.mrf.mxu0
        %v590 = vpop.f32.mrf.mxu0
        %v591 = vpop.f32.mrf.mxu0
        %592 = vdwg.mxu0
        %v593 = vlaneseq
        %v594 = vand.u32 %v593, 127
        %s595 = smul.u32 %s36, 8
        %v596 = vlaneseq
        %v597 = vshrl.u32 %v596, 7
        %v598 = vstv %s595
        %v599 = vadd.s32 %v598, %v597
        %vm600 = vcmp.gt.s32.totalorder %v398, 0
        %vm601 = vcmp.ne.s32.totalorder %v594, %v599
        %v602 = vsel %vm600, 1, 0
        %v603 = vlaneseq
        %v604 = vshrl.u32 %v603, 7
        %v605 = vsub.s32 0, %v604
        %v606 = vrot.slane %v602, %v605
        %vm607 = vcmp.eq.s32.totalorder %v606, 1
        %vm608 = vmand %vm607, %vm601
        %v609 = vsel %vm608, %v588, 1e+18
        %vm610 = vcmp.lt.s32.totalorder %v594, 8
        %v611 = vsel %vm610, %v609, -1e+30
        %v612 = vsub.f32 %v611, 1e+18
        %v613 = vmul.f32 %v612, 1.442695
        %v614 = vpow.pop %v613
        %615 = vadd.xlane.f32.xlu0 %v614
        %v616 = vpop.xlane.xlu0 %615
        %v617 = vrcp.pop %v616
        %v618 = vmul.f32 %v614, %v617
        %v619 = vpack.c.bf16 %v614, %v614
        %620 = vmatprep.subr.bf16.mxu0 0
        %621 = vmatpush1.bf16.msra.mxu0 %v544
        %622 = vmatprep.subr.bf16.mxu0 0
        %623 = vmatpush1.bf16.msra.mxu0 %v543
        %624 = vmatprep.subr.bf16.mxu0 0
        %625 = vmatpush1.bf16.msra.mxu0 %v542
        %626 = vmatprep.subr.bf16.mxu0 0
        %627 = vmatpush1.bf16.msra.mxu0 %v541
        %628 = vmatprep.subr.bf16.mxu0 0
        %629 = vmatpush1.bf16.msra.mxu0 %v540
        %630 = vmatprep.subr.bf16.mxu0 0
        %631 = vmatpush1.bf16.msra.mxu0 %v539
        %632 = vmatprep.subr.bf16.mxu0 0
        %633 = vmatpush1.bf16.msra.mxu0 %v538
        %634 = vmatprep.subr.bf16.mxu0 0
        %635 = vmatpush1.bf16.msra.mxu0 %v537
        %636 = vmatprep.subr.bf16.mxu0 0
        %637 = vmatpush2.bf16.msra.mxu0 0
        %638 = vmatprep.subr.bf16.mxu0 0
        %639 = vmatpush2.bf16.msra.mxu0 0
        %640 = vmatprep.subr.bf16.mxu0 0
        %641 = vmatpush2.bf16.msra.mxu0 0
        %642 = vmatprep.subr.bf16.mxu0 0
        %643 = vmatpush2.bf16.msra.mxu0 0
        %644 = vmatprep.subr.bf16.mxu0 0
        %645 = vmatpush2.bf16.msra.mxu0 0
        %646 = vmatprep.subr.bf16.mxu0 0
        %647 = vmatpush2.bf16.msra.mxu0 0
        %648 = vmatprep.subr.bf16.mxu0 0
        %649 = vmatpush2.bf16.msra.mxu0 0
        %650 = vmatprep.subr.bf16.mxu0 0
        %651 = vmatpush2.bf16.msra.mxu0 0
        %652 = vmatprep.mubr.bf16.mxu0 0
        %653 = vmatmul.mubr.bf16.gmra.mxu0 %v619
        %v654 = vpop.f32.mrf.mxu0
        %v655 = vadd.f32 0.0, %v654
        %v656 = vpop.f32.mrf.mxu0
        %v657 = vpop.f32.mrf.mxu0
        %v658 = vpop.f32.mrf.mxu0
        %659 = vdwg.mxu0
        %v660 = vmul.f32 %v655, %v617
        %v661 = vpack.c.bf16 %v660, %v660
        %v662 = vld [vmem:[#allocation8] sm:$0xf]
        %v663 = vld [vmem:[#allocation8 + $0x4] sm:$0xf]
        %v664 = vld [vmem:[#allocation8 + $0x8] sm:$0xf]
        %v665 = vld [vmem:[#allocation8 + $0xc] sm:$0xf]
        %v666 = vld [vmem:[#allocation8 + $0x10] sm:$0xf]
        %v667 = vld [vmem:[#allocation8 + $0x14] sm:$0xf]
        %v668 = vld [vmem:[#allocation8 + $0x18] sm:$0xf]
        %v669 = vld [vmem:[#allocation8 + $0x1c] sm:$0xf]
        %v670 = vld [vmem:[#allocation8 + $0x20] sm:$0xf]
        %v671 = vld [vmem:[#allocation8 + $0x24] sm:$0xf]
        %v672 = vld [vmem:[#allocation8 + $0x28] sm:$0xf]
        %v673 = vld [vmem:[#allocation8 + $0x2c] sm:$0xf]
        %v674 = vld [vmem:[#allocation8 + $0x30] sm:$0xf]
        %v675 = vld [vmem:[#allocation8 + $0x34] sm:$0xf]
        %v676 = vld [vmem:[#allocation8 + $0x38] sm:$0xf]
        %v677 = vld [vmem:[#allocation8 + $0x3c] sm:$0xf]
        %v678 = vld [vmem:[#allocation8 + $0x40] sm:$0xf]
        %v679 = vld [vmem:[#allocation8 + $0x44] sm:$0xf]
        %v680 = vld [vmem:[#allocation8 + $0x48] sm:$0xf]
        %v681 = vld [vmem:[#allocation8 + $0x4c] sm:$0xf]
        %v682 = vld [vmem:[#allocation8 + $0x50] sm:$0xf]
        %v683 = vld [vmem:[#allocation8 + $0x54] sm:$0xf]
        %v684 = vld [vmem:[#allocation8 + $0x58] sm:$0xf]
        %v685 = vld [vmem:[#allocation8 + $0x5c] sm:$0xf]
        %v686 = vld [vmem:[#allocation8 + $0x60] sm:$0xf]
        %v687 = vld [vmem:[#allocation8 + $0x64] sm:$0xf]
        %v688 = vld [vmem:[#allocation8 + $0x68] sm:$0xf]
        %v689 = vld [vmem:[#allocation8 + $0x6c] sm:$0xf]
        %v690 = vld [vmem:[#allocation8 + $0x70] sm:$0xf]
        %v691 = vld [vmem:[#allocation8 + $0x74] sm:$0xf]
        %v692 = vld [vmem:[#allocation8 + $0x78] sm:$0xf]
        %v693 = vld [vmem:[#allocation8 + $0x7c] sm:$0xf]
        %v726 = vunpack.c.l.b16 %v662
        %v727 = vunpack.c.l.b16 %v663
        %v728 = vunpack.c.l.b16 %v664
        %v729 = vunpack.c.l.b16 %v665
        %v730 = vunpack.c.l.b16 %v666
        %v731 = vunpack.c.l.b16 %v667
        %v732 = vunpack.c.l.b16 %v668
        %v733 = vunpack.c.l.b16 %v669
        %v734 = vunpack.c.l.b16 %v670
        %v735 = vunpack.c.l.b16 %v671
        %v736 = vunpack.c.l.b16 %v672
        %v737 = vunpack.c.l.b16 %v673
        %v738 = vunpack.c.l.b16 %v674
        %v739 = vunpack.c.l.b16 %v675
        %v740 = vunpack.c.l.b16 %v676
        %v741 = vunpack.c.l.b16 %v677
        %v742 = vunpack.c.l.b16 %v678
        %v743 = vunpack.c.l.b16 %v679
        %v744 = vunpack.c.l.b16 %v680
        %v745 = vunpack.c.l.b16 %v681
        %v746 = vunpack.c.l.b16 %v682
        %v747 = vunpack.c.l.b16 %v683
        %v748 = vunpack.c.l.b16 %v684
        %v749 = vunpack.c.l.b16 %v685
        %v750 = vunpack.c.l.b16 %v686
        %v751 = vunpack.c.l.b16 %v687
        %v752 = vunpack.c.l.b16 %v688
        %v753 = vunpack.c.l.b16 %v689
        %v754 = vunpack.c.l.b16 %v690
        %v755 = vunpack.c.l.b16 %v691
        %v756 = vunpack.c.l.b16 %v692
        %v757 = vunpack.c.l.b16 %v693
        %v758 = vpack.c.b16 %v727, %v726
        %v759 = vpack.c.b16 %v729, %v728
        %v760 = vpack.c.b16 %v731, %v730
        %v761 = vpack.c.b16 %v733, %v732
        %v762 = vpack.c.b16 %v735, %v734
        %v763 = vpack.c.b16 %v737, %v736
        %v764 = vpack.c.b16 %v739, %v738
        %v765 = vpack.c.b16 %v741, %v740
        %v766 = vpack.c.b16 %v743, %v742
        %v767 = vpack.c.b16 %v745, %v744
        %v768 = vpack.c.b16 %v747, %v746
        %v769 = vpack.c.b16 %v749, %v748
        %v770 = vpack.c.b16 %v751, %v750
        %v771 = vpack.c.b16 %v753, %v752
        %v772 = vpack.c.b16 %v755, %v754
        %v773 = vpack.c.b16 %v757, %v756
        %790 = vmatprep.subr.bf16.mxu0 0
        %791 = vmatpush1.bf16.msra.mxu0 %v765
        %792 = vmatprep.subr.bf16.mxu0 0
        %793 = vmatpush1.bf16.msra.mxu0 %v764
        %794 = vmatprep.subr.bf16.mxu0 0
        %795 = vmatpush1.bf16.msra.mxu0 %v763
        %796 = vmatprep.subr.bf16.mxu0 0
        %797 = vmatpush1.bf16.msra.mxu0 %v762
        %798 = vmatprep.subr.bf16.mxu0 0
        %799 = vmatpush1.bf16.msra.mxu0 %v761
        %800 = vmatprep.subr.bf16.mxu0 0
        %801 = vmatpush1.bf16.msra.mxu0 %v760
        %802 = vmatprep.subr.bf16.mxu0 0
        %803 = vmatpush1.bf16.msra.mxu0 %v759
        %804 = vmatprep.subr.bf16.mxu0 0
        %805 = vmatpush1.bf16.msra.mxu0 %v758
        %806 = vmatprep.subr.bf16.mxu0 0
        %807 = vmatpush2.bf16.msra.mxu0 %v773
        %808 = vmatprep.subr.bf16.mxu0 0
        %809 = vmatpush2.bf16.msra.mxu0 %v772
        %810 = vmatprep.subr.bf16.mxu0 0
        %811 = vmatpush2.bf16.msra.mxu0 %v771
        %812 = vmatprep.subr.bf16.mxu0 0
        %813 = vmatpush2.bf16.msra.mxu0 %v770
        %814 = vmatprep.subr.bf16.mxu0 0
        %815 = vmatpush2.bf16.msra.mxu0 %v769
        %816 = vmatprep.subr.bf16.mxu0 0
        %817 = vmatpush2.bf16.msra.mxu0 %v768
        %818 = vmatprep.subr.bf16.mxu0 0
        %819 = vmatpush2.bf16.msra.mxu0 %v767
        %820 = vmatprep.subr.bf16.mxu0 0
        %821 = vmatpush2.bf16.msra.mxu0 %v766
        %822 = vmatprep.mubr.bf16.mxu0 %v399
        %823 = vmatmul.mubr.bf16.gmra.mxu0 %v661
        %v824 = vpop.f32.mrf.mxu0
        %v825 = vadd.f32 0.0, %v824
        %v826 = vpop.f32.mrf.mxu0
        %v827 = vpop.f32.mrf.mxu0
        %v828 = vpop.f32.mrf.mxu0
        %829 = vdwg.mxu0
        %v830 = vxor.u32 %v825, 2147483648
        %v831 = vmul.f32 %v830, 1.442695
        %v832 = vpow.pop %v831
        %v833 = vadd.f32 %v832, 1.0
        %v834 = vrcp.pop %v833
        %v835 = vmul.f32 1.0, %v834
        %v836 = vmul.f32 %v835, %v381
        %837 = vst [vmem:[%s369] sm:$0xff] %v836
        %838 = vst [vmem:[%s376] sm:$0xff] %v618
        %s839 = sand.u32 %s175, 1
        %s840 = scalar_lea.sflag [#allocation4], %s839
        %s841 = sand.u32 %s175, 1
        %s842 = smul.addr %s841, 8
        %s843 = scalar_lea.vmem [#allocation10], %s842
        %s844 = sand.u32 %s203, 1
        %s845 = scalar_lea.sflag [#allocation12], %s844
        %s846 = sand.u32 %s203, 1
        %s847 = smul.addr %s846, 8
        %s848 = scalar_lea.vmem [#allocation11], %s847
        // Predicated region
        $region57: #{tpu_custom_call.1} parent=39 // pred_check
          %p849 = pneg %p185
        $region58: #{tpu_custom_call.1} parent=39 // pred_check_branch
          %851 = sbr.rel (%p849) target = $region60
        $region59: #{tpu_custom_call.1} parent=39 // pred_region
          %s853 = ssub.s32 128, 128
          %854 = vsyncadd %s840, %s853
          %s855 = smul.addr %s36, 2
          %s856 = sadd.s32 %s35, %s855
          %s857 = smul.addr %s856, 128
          %s858 = scalar_lea.hbm %s5, %s857
          %s860 = sshll.u32 %s843, 4
          %s861 = int_to_ptr.vmem [resolvable:$true] %s860
          %863 = dma.vmem_to_hbm [thread:$0]  %s861, 128, %s858, %s840
        $region60: #{tpu_custom_call.1} parent=39 // pred_fallthru
          _
        // Predicated region
        $region61: #{tpu_custom_call.1} parent=39 // pred_check
          %p864 = pneg %p213
        $region62: #{tpu_custom_call.1} parent=39 // pred_check_branch
          %866 = sbr.rel (%p864) target = $region64
        $region63: #{tpu_custom_call.1} parent=39 // pred_region
          %s868 = ssub.s32 128, 128
          %869 = vsyncadd %s845, %s868
          %s870 = smul.addr %s36, 2
          %s871 = sadd.s32 %s35, %s870
          %s872 = smul.addr %s871, 128
          %s873 = scalar_lea.hbm %s6, %s872
          %s875 = sshll.u32 %s848, 4
          %s876 = int_to_ptr.vmem [resolvable:$true] %s875
          %878 = dma.vmem_to_hbm [thread:$0]  %s876, 128, %s873, %s845
        $region64: #{tpu_custom_call.1} parent=39 // pred_fallthru
          _
      $region40: #{tpu_custom_call.1} parent=5 // pred_fallthru
        _
      %p879 = scmp.le.s32.totalorder 2, %s26
      // Predicated region
      $region65: #{tpu_custom_call.1} parent=5 // pred_check
        %p880 = pneg %p879
      $region66: #{tpu_custom_call.1} parent=5 // pred_check_branch
        %882 = sbr.rel (%p880) target = $region68
      $region67: #{tpu_custom_call.1} parent=5 // pred_region
        %s883 = ssub.s32 %s26, 2
        // Predicated region
        $region69: #{tpu_custom_call.1} parent=67 // pred_check
          %p884 = pneg %p191
        $region70: #{tpu_custom_call.1} parent=67 // pred_check_branch
          %886 = sbr.rel (%p884) target = $region72
        $region71: #{tpu_custom_call.1} parent=67 // pred_region
          %s887 = sand.u32 %s176, 1
          %s888 = scalar_lea.sflag [#allocation4], %s887
          %s889 = sand.u32 %s176, 1
          %s890 = smul.addr %s889, 8
          %s891 = scalar_lea.vmem [#allocation10], %s890
          %892 = dma.done %s888, 128
        $region72: #{tpu_custom_call.1} parent=67 // pred_fallthru
          _
        // Predicated region
        $region73: #{tpu_custom_call.1} parent=67 // pred_check
          %p893 = pneg %p219
        $region74: #{tpu_custom_call.1} parent=67 // pred_check_branch
          %895 = sbr.rel (%p893) target = $region76
        $region75: #{tpu_custom_call.1} parent=67 // pred_region
          %s896 = sand.u32 %s204, 1
          %s897 = scalar_lea.sflag [#allocation12], %s896
          %s898 = sand.u32 %s204, 1
          %s899 = smul.addr %s898, 8
          %s900 = scalar_lea.vmem [#allocation11], %s899
          %901 = dma.done %s897, 128
        $region76: #{tpu_custom_call.1} parent=67 // pred_fallthru
          _
      $region68: #{tpu_custom_call.1} parent=5 // pred_fallthru
        _
    $region6: #{tpu_custom_call.1} parent=1 // loop_footer
      %s30 = sadd.s32 1, %s26
    $region7: #{tpu_custom_call.1} parent=1 // loop_footer_branch
      %25 = sbr.rel target = $region3
    $region8: #{tpu_custom_call.1} parent=1 // loop_exit
      _
    %902 = vsyncpa [#allocation3], 1
    %s903 = scalar_lea.sflag [#allocation3], 1
    %904 = vsyncpa %s903, 1
    %905 = vsyncpa [#allocation6], 1
    %s906 = scalar_lea.sflag [#allocation6], 1
    %907 = vsyncpa %s906, 1
    %908 = vsyncpa [#allocation9], 1
    %909 = vsyncpa [#allocation4], 1
    %s910 = scalar_lea.sflag [#allocation4], 1
    %911 = vsyncpa %s910, 1
    %912 = vsyncpa [#allocation12], 1
    %s913 = scalar_lea.sflag [#allocation12], 1
    %914 = vsyncpa %s913, 1

</llo_original>
